<compile_context>
chip_gen: v5e
topology: v5e:2x2
jax: 0.10.0
libtpu: 0.0.40
codegen_flags: <defaults>
</compile_context>

<pallas_src>
import functools

import jax
import jax.numpy as jnp
import numpy as np
from jax.experimental import pallas as pl
from jax.experimental.pallas import tpu as pltpu


def _silu(v):
    return v * jax.nn.sigmoid(v)


def _block_kernel(x_ref, w1_ref, s1_ref, b1_ref, w2_ref, s2_ref, b2_ref,
                  w3_ref, bias3_ref, *rest, H, W, cin, cout, has_skip):
    """One batch-block per grid step; everything in fused-lane (row, W*C) layout.

    x_ref:           (bblk, H+2, (W+2)*cin)  reflect-padded input, f32
    w{1,2,3}_ref:    (3, K, W*cout)          banded per-ky weight matrices, bf16
    s*/b*/bias3_ref: (1, W*cout)             folded BN scale/shift, conv3 bias (f32)
    wskip_ref:       (Wp*cin, W*cout)        banded 1x1 skip conv, bf16 (if present)
    o_ref:           (bblk, H, W*cout)       f32 output
    buf:             (bblk, H+2, W*cout)     row-padded f32 scratch (reused twice)
    """
    if has_skip:
        wskip_ref, o_ref, buf = rest
    else:
        o_ref, buf = rest

    bblk = o_ref.shape[0]
    WC = W * cout
    M = bblk * H
    bf16 = jnp.bfloat16

    def conv_rows(src_ref, w_ref):
        # One matmul per ky row; kx taps + width padding are already folded
        # into the banded (bf16) weight matrices. M folds (batch, row) together.
        acc = None
        for dy in range(3):                                   # static unroll
            lhs = src_ref[:, dy:dy + H, :].reshape(M, -1).astype(bf16)
            d = jnp.dot(lhs, w_ref[dy],                       # bf16 x bf16 -> f32
                        preferred_element_type=jnp.float32)
            acc = d if acc is None else acc + d
        return acc                                            # (M, WC) f32

    # conv1 (reflect padding done in wrapper) + BN1 (folded) + SiLU
    y1 = _silu(conv_rows(x_ref, w1_ref) * s1_ref[...] + b1_ref[...])

    # Row-padded scratch: zero only the two border rows. Done every step so a
    # "parallel" grid sharding (v7x megacore) stays correct.
    zrow = jnp.zeros((bblk, 1, WC), jnp.float32)
    buf[:, 0:1, :] = zrow
    buf[:, H + 1:H + 2, :] = zrow

    buf[:, 1:H + 1, :] = y1.reshape(bblk, H, WC)
    # conv2 + BN2 (folded) + SiLU
    y2 = _silu(conv_rows(buf, w2_ref) * s2_ref[...] + b2_ref[...])

    buf[:, 1:H + 1, :] = y2.reshape(bblk, H, WC)      # reuse the same scratch
    # conv3 (+ bias)
    y3 = conv_rows(buf, w3_ref) + bias3_ref[...]

    # skip path
    if has_skip:
        xs = x_ref[:, 1:H + 1, :].reshape(M, -1).astype(bf16)
        skip = jnp.dot(xs, wskip_ref[...], preferred_element_type=jnp.float32)
    else:
        # nn.Identity (cin == cout): interior of x, lane-offset slice by cin.
        skip = x_ref[:, 1:H + 1, cin:cin + W * cin].reshape(M, W * cin)

    o_ref[...] = _silu(y3 + skip).reshape(bblk, H, WC)


def _banded_conv_weights(w_hwio, in_width, out_width, col_off):
    """Fold the kx taps (and width padding) of a 3x3 conv into per-ky banded
    matrices: returns (3, in_width*cin, out_width*cout) such that
    out_row_y = sum_ky in_row_{y+ky} @ banded[ky] in the fused-lane layout."""
    kh, kw, ci, co = w_hwio.shape
    sel = np.zeros((kw, out_width, in_width), np.float32)
    for dx in range(kw):
        for x in range(out_width):
            ix = x + dx + col_off
            if 0 <= ix < in_width:
                sel[dx, x, ix] = 1.0
    banded = jnp.einsum("axi,dacz->dicxz", jnp.asarray(sel), w_hwio,
                        precision=jax.lax.Precision.HIGHEST)
    return banded.reshape(kh, in_width * ci, out_width * co)


def _banded_skip_weights(wskip, w, wp):
    """1x1 skip conv as a banded (Wp*cin, W*cout) matrix over padded rows."""
    cin, cout = wskip.shape
    sel = np.zeros((w, wp), np.float32)
    for x in range(w):
        sel[x, x + 1] = 1.0          # interior column x+1 of the padded row
    banded = jnp.einsum("xi,cz->icxz", jnp.asarray(sel), wskip,
                        precision=jax.lax.Precision.HIGHEST)
    return banded.reshape(wp * cin, w * cout)


def autoencoder_block_2d(x_nchw, p, *, bblk=None):
    """x_nchw: (B, Cin, H, W) float32 -> (B, Cout, H, W) float32."""
    B, Cin, H, W = x_nchw.shape
    Cout = p["w1"].shape[-1]
    Hp, Wp = H + 2, W + 2
    WC = W * Cout
    wskip = p.get("wskip", None)
    has_skip = wskip is not None

    # Fold the whole batch into one grid step by default (amortizes per-step
    # overhead; M = bblk*H). For large B, choose bblk to stay inside VMEM and
    # to give >= 2 grid steps so v7x can shard the "parallel" axis over 2 TCs.
    if bblk is None:
        bblk = B
    assert B % bblk == 0, (B, bblk)

    bf16 = jnp.bfloat16

    # glue: NCHW -> NHWC, reflect pad (torch padding_mode='reflect'), fuse lanes
    x = jnp.transpose(x_nchw, (0, 2, 3, 1)).astype(jnp.float32)
    xp = jnp.pad(x, ((0, 0), (1, 1), (1, 1), (0, 0)), mode="reflect")
    xp_f = xp.reshape(B, Hp, Wp * Cin)

    # banded weights (pre-cast to bf16 once here; they feed the MXU directly):
    # conv1 consumes the reflect-padded row; conv2/3 consume un-padded rows
    # with the 'SAME' zero padding folded into the band.
    w1b = _banded_conv_weights(p["w1"], Wp, W, col_off=0).astype(bf16)   # (3, Wp*Cin, WC)
    w2b = _banded_conv_weights(p["w2"], W, W, col_off=-1).astype(bf16)   # (3, WC, WC)
    w3b = _banded_conv_weights(p["w3"], W, W, col_off=-1).astype(bf16)   # (3, WC, WC)

    # per-channel BN scale/shift + conv3 bias (f32), tiled to the fused lane layout
    s1t, b1t = jnp.tile(p["s1"], (1, W)), jnp.tile(p["b1"], (1, W))
    s2t, b2t = jnp.tile(p["s2"], (1, W)), jnp.tile(p["b2"], (1, W))
    bias3t = jnp.tile(p["bias3"], (1, W))

    args = [xp_f, w1b, s1t, b1t, w2b, s2t, b2t, w3b, bias3t]
    in_specs = [
        pl.BlockSpec((bblk, Hp, Wp * Cin), lambda i: (i, 0, 0)),   # x (padded)
        pl.BlockSpec((3, Wp * Cin, WC), lambda i: (0, 0, 0)),      # w1 banded
        pl.BlockSpec((1, WC), lambda i: (0, 0)),                   # s1
        pl.BlockSpec((1, WC), lambda i: (0, 0)),                   # b1
        pl.BlockSpec((3, WC, WC), lambda i: (0, 0, 0)),            # w2 banded
        pl.BlockSpec((1, WC), lambda i: (0, 0)),                   # s2
        pl.BlockSpec((1, WC), lambda i: (0, 0)),                   # b2
        pl.BlockSpec((3, WC, WC), lambda i: (0, 0, 0)),            # w3 banded
        pl.BlockSpec((1, WC), lambda i: (0, 0)),                   # bias3
    ]
    if has_skip:
        args.append(_banded_skip_weights(wskip, W, Wp).astype(bf16))
        in_specs.append(pl.BlockSpec((Wp * Cin, WC), lambda i: (0, 0)))

    kernel = functools.partial(_block_kernel, H=H, W=W, cin=Cin, cout=Cout,
                               has_skip=has_skip)

    out_f = pl.pallas_call(
        kernel,
        out_shape=jax.ShapeDtypeStruct((B, H, WC), jnp.float32),
        grid_spec=pltpu.PrefetchScalarGridSpec(
            num_scalar_prefetch=0,
            grid=(B // bblk,),
            in_specs=in_specs,
            out_specs=pl.BlockSpec((bblk, H, WC), lambda i: (i, 0, 0)),
            scratch_shapes=[pltpu.VMEM((bblk, Hp, WC), jnp.float32)],
        ),
        compiler_params=pltpu.CompilerParams(
            dimension_semantics=("parallel",)),
    )(*args)

    # lane-dense (B, H, W*Cout) -> NCHW
    return jnp.transpose(out_f.reshape(B, H, W, Cout), (0, 3, 1, 2))


def init_params(key, cin, cout):
    """Deterministic synthetic parameters (shapes follow the torch module)."""
    ks = jax.random.split(key, 8)

    def conv_w(k, kh, kw, ci, co):
        return jax.random.normal(k, (kh, kw, ci, co), jnp.float32) / np.sqrt(ci * kh * kw)

    def bn_fold(k, c):
        kg, kb, km, kv = jax.random.split(k, 4)
        gamma = 1.0 + 0.1 * jax.random.normal(kg, (c,), jnp.float32)
        beta = 0.1 * jax.random.normal(kb, (c,), jnp.float32)
        mean = 0.1 * jax.random.normal(km, (c,), jnp.float32)
        var = jnp.abs(1.0 + 0.1 * jax.random.normal(kv, (c,), jnp.float32))
        scale = gamma / jnp.sqrt(var + 1e-5)
        shift = beta - mean * scale
        return scale.reshape(1, c), shift.reshape(1, c)

    w1 = conv_w(ks[0], 3, 3, cin, cout)
    w2 = conv_w(ks[1], 3, 3, cout, cout)
    w3 = conv_w(ks[2], 3, 3, cout, cout)
    bias3 = 0.1 * jax.random.normal(ks[3], (1, cout), jnp.float32)
    wskip = (conv_w(ks[4], 1, 1, cin, cout).reshape(cin, cout)
             if cin != cout else None)          # nn.Identity when cin == cout
    s1, b1 = bn_fold(ks[5], cout)
    s2, b2 = bn_fold(ks[6], cout)
    return dict(w1=w1, w2=w2, w3=w3, bias3=bias3, wskip=wskip,
                s1=s1, b1=b1, s2=s2, b2=b2)


def ref_forward(x_nchw, p):
    """Pure-JAX reference (eval-mode BN; convs at bf16-in / f32-accumulate,
    matching the kernel's MXU numerics)."""
    dn = ("NHWC", "HWIO", "NHWC")
    bf16, f32 = jnp.bfloat16, jnp.float32

    def conv(h, w, padding):
        return jax.lax.conv_general_dilated(
            h.astype(bf16), w.astype(bf16), (1, 1), padding,
            dimension_numbers=dn, preferred_element_type=f32)

    x = jnp.transpose(x_nchw, (0, 2, 3, 1)).astype(f32)
    xp = jnp.pad(x, ((0, 0), (1, 1), (1, 1), (0, 0)), mode="reflect")
    h = _silu(conv(xp, p["w1"], "VALID") * p["s1"][0] + p["b1"][0])
    h = _silu(conv(h, p["w2"], "SAME") * p["s2"][0] + p["b2"][0])
    h = conv(h, p["w3"], "SAME") + p["bias3"][0]
    if p.get("wskip", None) is not None:
        skip = jnp.einsum("nhwc,co->nhwo", x.astype(bf16),
                          p["wskip"].astype(bf16), preferred_element_type=f32)
    else:
        skip = x                         # nn.Identity: exact f32 passthrough
    return jnp.transpose(_silu(h + skip), (0, 3, 1, 2))


if __name__ == "__main__":
    B, Cin, Cout, H, W = 2, 4, 8, 16, 16

    root = jax.random.PRNGKey(0)
    kx, kp = jax.random.split(root)
    x = jax.random.normal(kx, (B, Cin, H, W), jnp.float32)
    params = init_params(kp, Cin, Cout)

    out = jax.block_until_ready(autoencoder_block_2d(x, params))
    ref = jax.block_until_ready(ref_forward(x, params))

    assert out.shape == (B, Cout, H, W), out.shape
    # Kernel and reference both run matmuls as bf16-in / f32-accumulate; the
    # residual difference is only accumulation-order noise.
    assert np.allclose(np.asarray(out), np.asarray(ref), atol=1e-2, rtol=1e-2), (
        float(np.max(np.abs(np.asarray(out) - np.asarray(ref)))))
    print("KERNEL_OK")
</pallas_src>

<mosaic_0001>
module attributes {stable_mosaic.version = 11 : i64} {
  func.func @_block_kernel(%arg0: i32, %arg1: memref<2x18x72xf32, #tpu.memory_space<vmem>>, %arg2: memref<3x72x128xbf16, #tpu.memory_space<vmem>>, %arg3: memref<1x128xf32, #tpu.memory_space<vmem>>, %arg4: memref<1x128xf32, #tpu.memory_space<vmem>>, %arg5: memref<3x128x128xbf16, #tpu.memory_space<vmem>>, %arg6: memref<1x128xf32, #tpu.memory_space<vmem>>, %arg7: memref<1x128xf32, #tpu.memory_space<vmem>>, %arg8: memref<3x128x128xbf16, #tpu.memory_space<vmem>>, %arg9: memref<1x128xf32, #tpu.memory_space<vmem>>, %arg10: memref<72x128xbf16, #tpu.memory_space<vmem>>, %arg11: memref<2x16x128xf32, #tpu.memory_space<vmem>>, %arg12: memref<2x18x128xf32, #tpu.memory_space<vmem>>) attributes {dimension_semantics = [#tpu.dimension_semantics<parallel>], iteration_bounds = array<i64: 1>, scalar_prefetch = 0 : i64, scratch_operands = 1 : i64, tpu.core_type = #tpu.core_type<tc>, window_params = [{transform_indices = @transform_0, window_bounds = array<i64: 2, 18, 72>}, {pipeline_mode = #tpu.pipeline_mode<synchronous>, transform_indices = @transform_1, window_bounds = array<i64: 3, 72, 128>}, {pipeline_mode = #tpu.pipeline_mode<synchronous>, transform_indices = @transform_2, window_bounds = array<i64: 1, 128>}, {pipeline_mode = #tpu.pipeline_mode<synchronous>, transform_indices = @transform_3, window_bounds = array<i64: 1, 128>}, {pipeline_mode = #tpu.pipeline_mode<synchronous>, transform_indices = @transform_4, window_bounds = array<i64: 3, 128, 128>}, {pipeline_mode = #tpu.pipeline_mode<synchronous>, transform_indices = @transform_5, window_bounds = array<i64: 1, 128>}, {pipeline_mode = #tpu.pipeline_mode<synchronous>, transform_indices = @transform_6, window_bounds = array<i64: 1, 128>}, {pipeline_mode = #tpu.pipeline_mode<synchronous>, transform_indices = @transform_7, window_bounds = array<i64: 3, 128, 128>}, {pipeline_mode = #tpu.pipeline_mode<synchronous>, transform_indices = @transform_8, window_bounds = array<i64: 1, 128>}, {pipeline_mode = #tpu.pipeline_mode<synchronous>, transform_indices = @transform_9, window_bounds = array<i64: 72, 128>}, {transform_indices = @transform_10, window_bounds = array<i64: 2, 16, 128>}]} {
    %c0 = arith.constant 0 : index
    %c0_0 = arith.constant 0 : index
    %c0_1 = arith.constant 0 : index
    %0 = vector.load %arg1[%c0, %c0_0, %c0_1] : memref<2x18x72xf32, #tpu.memory_space<vmem>>, vector<2x16x72xf32>
    %1 = vector.shape_cast %0 : vector<2x16x72xf32> to vector<32x72xf32>
    %2 = arith.truncf %1 : vector<32x72xf32> to vector<32x72xbf16>
    %c0_2 = arith.constant 0 : index
    %c0_3 = arith.constant 0 : index
    %c0_4 = arith.constant 0 : index
    %3 = vector.load %arg2[%c0_2, %c0_3, %c0_4] : memref<3x72x128xbf16, #tpu.memory_space<vmem>>, vector<1x72x128xbf16>
    %4 = vector.shape_cast %3 : vector<1x72x128xbf16> to vector<72x128xbf16>
    %cst = arith.constant dense<0.000000e+00> : vector<32x128xf32>
    %5 = tpu.matmul %2, %4, %cst {dimension_numbers = #tpu.dot_dimension_numbers<[1], [0], [0], [1], [0, 0, 1, 1], [], []>} : vector<32x72xbf16>, vector<72x128xbf16>, vector<32x128xf32> -> vector<32x128xf32>
    %c0_5 = arith.constant 0 : index
    %c1 = arith.constant 1 : index
    %c0_6 = arith.constant 0 : index
    %6 = vector.load %arg1[%c0_5, %c1, %c0_6] : memref<2x18x72xf32, #tpu.memory_space<vmem>>, vector<2x16x72xf32>
    %7 = vector.shape_cast %6 : vector<2x16x72xf32> to vector<32x72xf32>
    %8 = arith.truncf %7 : vector<32x72xf32> to vector<32x72xbf16>
    %c1_7 = arith.constant 1 : index
    %c0_8 = arith.constant 0 : index
    %c0_9 = arith.constant 0 : index
    %9 = vector.load %arg2[%c1_7, %c0_8, %c0_9] : memref<3x72x128xbf16, #tpu.memory_space<vmem>>, vector<1x72x128xbf16>
    %10 = vector.shape_cast %9 : vector<1x72x128xbf16> to vector<72x128xbf16>
    %cst_10 = arith.constant dense<0.000000e+00> : vector<32x128xf32>
    %11 = tpu.matmul %8, %10, %cst_10 {dimension_numbers = #tpu.dot_dimension_numbers<[1], [0], [0], [1], [0, 0, 1, 1], [], []>} : vector<32x72xbf16>, vector<72x128xbf16>, vector<32x128xf32> -> vector<32x128xf32>
    %12 = arith.addf %5, %11 : vector<32x128xf32>
    %c0_11 = arith.constant 0 : index
    %c2 = arith.constant 2 : index
    %c0_12 = arith.constant 0 : index
    %13 = vector.load %arg1[%c0_11, %c2, %c0_12] : memref<2x18x72xf32, #tpu.memory_space<vmem>>, vector<2x16x72xf32>
    %14 = vector.shape_cast %13 : vector<2x16x72xf32> to vector<32x72xf32>
    %15 = arith.truncf %14 : vector<32x72xf32> to vector<32x72xbf16>
    %c2_13 = arith.constant 2 : index
    %c0_14 = arith.constant 0 : index
    %c0_15 = arith.constant 0 : index
    %16 = vector.load %arg2[%c2_13, %c0_14, %c0_15] : memref<3x72x128xbf16, #tpu.memory_space<vmem>>, vector<1x72x128xbf16>
    %17 = vector.shape_cast %16 : vector<1x72x128xbf16> to vector<72x128xbf16>
    %cst_16 = arith.constant dense<0.000000e+00> : vector<32x128xf32>
    %18 = tpu.matmul %15, %17, %cst_16 {dimension_numbers = #tpu.dot_dimension_numbers<[1], [0], [0], [1], [0, 0, 1, 1], [], []>} : vector<32x72xbf16>, vector<72x128xbf16>, vector<32x128xf32> -> vector<32x128xf32>
    %19 = arith.addf %12, %18 : vector<32x128xf32>
    %c0_17 = arith.constant 0 : index
    %c0_18 = arith.constant 0 : index
    %20 = vector.load %arg3[%c0_17, %c0_18] : memref<1x128xf32, #tpu.memory_space<vmem>>, vector<1x128xf32>
    %21 = vector.broadcast %20 : vector<1x128xf32> to vector<32x128xf32>
    %22 = arith.mulf %19, %21 : vector<32x128xf32>
    %c0_19 = arith.constant 0 : index
    %c0_20 = arith.constant 0 : index
    %23 = vector.load %arg4[%c0_19, %c0_20] : memref<1x128xf32, #tpu.memory_space<vmem>>, vector<1x128xf32>
    %24 = vector.broadcast %23 : vector<1x128xf32> to vector<32x128xf32>
    %25 = arith.addf %22, %24 : vector<32x128xf32>
    %26 = arith.negf %25 : vector<32x128xf32>
    %27 = math.exp %26 : vector<32x128xf32>
    %cst_21 = arith.constant 1.000000e+00 : f32
    %28 = vector.broadcast %cst_21 : f32 to vector<32x128xf32>
    %29 = arith.addf %28, %27 : vector<32x128xf32>
    %30 = arith.divf %28, %29 : vector<32x128xf32>
    %31 = arith.mulf %25, %30 : vector<32x128xf32>
    %cst_22 = arith.constant 0.000000e+00 : f32
    %32 = vector.broadcast %cst_22 : f32 to vector<2x1x128xf32>
    %c0_23 = arith.constant 0 : index
    %c0_24 = arith.constant 0 : index
    %c0_25 = arith.constant 0 : index
    %33 = vector.load %arg12[%c0_23, %c0_24, %c0_25] : memref<2x18x128xf32, #tpu.memory_space<vmem>>, vector<2x1x128xf32>
    tpu.vector_store %arg12[%c0_23, %c0_24, %c0_25], %32 {strides = array<i32>} : memref<2x18x128xf32, #tpu.memory_space<vmem>>, vector<2x1x128xf32>,
    %c0_26 = arith.constant 0 : index
    %c17 = arith.constant 17 : index
    %c0_27 = arith.constant 0 : index
    %34 = vector.load %arg12[%c0_26, %c17, %c0_27] : memref<2x18x128xf32, #tpu.memory_space<vmem>>, vector<2x1x128xf32>
    tpu.vector_store %arg12[%c0_26, %c17, %c0_27], %32 {strides = array<i32>} : memref<2x18x128xf32, #tpu.memory_space<vmem>>, vector<2x1x128xf32>,
    %35 = vector.shape_cast %31 : vector<32x128xf32> to vector<2x16x128xf32>
    %c0_28 = arith.constant 0 : index
    %c1_29 = arith.constant 1 : index
    %c0_30 = arith.constant 0 : index
    %36 = vector.load %arg12[%c0_28, %c1_29, %c0_30] : memref<2x18x128xf32, #tpu.memory_space<vmem>>, vector<2x16x128xf32>
    tpu.vector_store %arg12[%c0_28, %c1_29, %c0_30], %35 {strides = array<i32>} : memref<2x18x128xf32, #tpu.memory_space<vmem>>, vector<2x16x128xf32>,
    %c0_31 = arith.constant 0 : index
    %c0_32 = arith.constant 0 : index
    %c0_33 = arith.constant 0 : index
    %37 = vector.load %arg12[%c0_31, %c0_32, %c0_33] : memref<2x18x128xf32, #tpu.memory_space<vmem>>, vector<2x16x128xf32>
    %38 = vector.shape_cast %37 : vector<2x16x128xf32> to vector<32x128xf32>
    %39 = arith.truncf %38 : vector<32x128xf32> to vector<32x128xbf16>
    %c0_34 = arith.constant 0 : index
    %c0_35 = arith.constant 0 : index
    %c0_36 = arith.constant 0 : index
    %40 = vector.load %arg5[%c0_34, %c0_35, %c0_36] : memref<3x128x128xbf16, #tpu.memory_space<vmem>>, vector<1x128x128xbf16>
    %41 = vector.shape_cast %40 : vector<1x128x128xbf16> to vector<128x128xbf16>
    %cst_37 = arith.constant dense<0.000000e+00> : vector<32x128xf32>
    %42 = tpu.matmul %39, %41, %cst_37 {dimension_numbers = #tpu.dot_dimension_numbers<[1], [0], [0], [1], [0, 0, 1, 1], [], []>} : vector<32x128xbf16>, vector<128x128xbf16>, vector<32x128xf32> -> vector<32x128xf32>
    %c0_38 = arith.constant 0 : index
    %c1_39 = arith.constant 1 : index
    %c0_40 = arith.constant 0 : index
    %43 = vector.load %arg12[%c0_38, %c1_39, %c0_40] : memref<2x18x128xf32, #tpu.memory_space<vmem>>, vector<2x16x128xf32>
    %44 = vector.shape_cast %43 : vector<2x16x128xf32> to vector<32x128xf32>
    %45 = arith.truncf %44 : vector<32x128xf32> to vector<32x128xbf16>
    %c1_41 = arith.constant 1 : index
    %c0_42 = arith.constant 0 : index
    %c0_43 = arith.constant 0 : index
    %46 = vector.load %arg5[%c1_41, %c0_42, %c0_43] : memref<3x128x128xbf16, #tpu.memory_space<vmem>>, vector<1x128x128xbf16>
    %47 = vector.shape_cast %46 : vector<1x128x128xbf16> to vector<128x128xbf16>
    %cst_44 = arith.constant dense<0.000000e+00> : vector<32x128xf32>
    %48 = tpu.matmul %45, %47, %cst_44 {dimension_numbers = #tpu.dot_dimension_numbers<[1], [0], [0], [1], [0, 0, 1, 1], [], []>} : vector<32x128xbf16>, vector<128x128xbf16>, vector<32x128xf32> -> vector<32x128xf32>
    %49 = arith.addf %42, %48 : vector<32x128xf32>
    %c0_45 = arith.constant 0 : index
    %c2_46 = arith.constant 2 : index
    %c0_47 = arith.constant 0 : index
    %50 = vector.load %arg12[%c0_45, %c2_46, %c0_47] : memref<2x18x128xf32, #tpu.memory_space<vmem>>, vector<2x16x128xf32>
    %51 = vector.shape_cast %50 : vector<2x16x128xf32> to vector<32x128xf32>
    %52 = arith.truncf %51 : vector<32x128xf32> to vector<32x128xbf16>
    %c2_48 = arith.constant 2 : index
    %c0_49 = arith.constant 0 : index
    %c0_50 = arith.constant 0 : index
    %53 = vector.load %arg5[%c2_48, %c0_49, %c0_50] : memref<3x128x128xbf16, #tpu.memory_space<vmem>>, vector<1x128x128xbf16>
    %54 = vector.shape_cast %53 : vector<1x128x128xbf16> to vector<128x128xbf16>
    %cst_51 = arith.constant dense<0.000000e+00> : vector<32x128xf32>
    %55 = tpu.matmul %52, %54, %cst_51 {dimension_numbers = #tpu.dot_dimension_numbers<[1], [0], [0], [1], [0, 0, 1, 1], [], []>} : vector<32x128xbf16>, vector<128x128xbf16>, vector<32x128xf32> -> vector<32x128xf32>
    %56 = arith.addf %49, %55 : vector<32x128xf32>
    %c0_52 = arith.constant 0 : index
    %c0_53 = arith.constant 0 : index
    %57 = vector.load %arg6[%c0_52, %c0_53] : memref<1x128xf32, #tpu.memory_space<vmem>>, vector<1x128xf32>
    %58 = vector.broadcast %57 : vector<1x128xf32> to vector<32x128xf32>
    %59 = arith.mulf %56, %58 : vector<32x128xf32>
    %c0_54 = arith.constant 0 : index
    %c0_55 = arith.constant 0 : index
    %60 = vector.load %arg7[%c0_54, %c0_55] : memref<1x128xf32, #tpu.memory_space<vmem>>, vector<1x128xf32>
    %61 = vector.broadcast %60 : vector<1x128xf32> to vector<32x128xf32>
    %62 = arith.addf %59, %61 : vector<32x128xf32>
    %63 = arith.negf %62 : vector<32x128xf32>
    %64 = math.exp %63 : vector<32x128xf32>
    %cst_56 = arith.constant 1.000000e+00 : f32
    %65 = vector.broadcast %cst_56 : f32 to vector<32x128xf32>
    %66 = arith.addf %65, %64 : vector<32x128xf32>
    %67 = arith.divf %65, %66 : vector<32x128xf32>
    %68 = arith.mulf %62, %67 : vector<32x128xf32>
    %69 = vector.shape_cast %68 : vector<32x128xf32> to vector<2x16x128xf32>
    %c0_57 = arith.constant 0 : index
    %c1_58 = arith.constant 1 : index
    %c0_59 = arith.constant 0 : index
    %70 = vector.load %arg12[%c0_57, %c1_58, %c0_59] : memref<2x18x128xf32, #tpu.memory_space<vmem>>, vector<2x16x128xf32>
    tpu.vector_store %arg12[%c0_57, %c1_58, %c0_59], %69 {strides = array<i32>} : memref<2x18x128xf32, #tpu.memory_space<vmem>>, vector<2x16x128xf32>,
    %c0_60 = arith.constant 0 : index
    %c0_61 = arith.constant 0 : index
    %c0_62 = arith.constant 0 : index
    %71 = vector.load %arg12[%c0_60, %c0_61, %c0_62] : memref<2x18x128xf32, #tpu.memory_space<vmem>>, vector<2x16x128xf32>
    %72 = vector.shape_cast %71 : vector<2x16x128xf32> to vector<32x128xf32>
    %73 = arith.truncf %72 : vector<32x128xf32> to vector<32x128xbf16>
    %c0_63 = arith.constant 0 : index
    %c0_64 = arith.constant 0 : index
    %c0_65 = arith.constant 0 : index
    %74 = vector.load %arg8[%c0_63, %c0_64, %c0_65] : memref<3x128x128xbf16, #tpu.memory_space<vmem>>, vector<1x128x128xbf16>
    %75 = vector.shape_cast %74 : vector<1x128x128xbf16> to vector<128x128xbf16>
    %cst_66 = arith.constant dense<0.000000e+00> : vector<32x128xf32>
    %76 = tpu.matmul %73, %75, %cst_66 {dimension_numbers = #tpu.dot_dimension_numbers<[1], [0], [0], [1], [0, 0, 1, 1], [], []>} : vector<32x128xbf16>, vector<128x128xbf16>, vector<32x128xf32> -> vector<32x128xf32>
    %c0_67 = arith.constant 0 : index
    %c1_68 = arith.constant 1 : index
    %c0_69 = arith.constant 0 : index
    %77 = vector.load %arg12[%c0_67, %c1_68, %c0_69] : memref<2x18x128xf32, #tpu.memory_space<vmem>>, vector<2x16x128xf32>
    %78 = vector.shape_cast %77 : vector<2x16x128xf32> to vector<32x128xf32>
    %79 = arith.truncf %78 : vector<32x128xf32> to vector<32x128xbf16>
    %c1_70 = arith.constant 1 : index
    %c0_71 = arith.constant 0 : index
    %c0_72 = arith.constant 0 : index
    %80 = vector.load %arg8[%c1_70, %c0_71, %c0_72] : memref<3x128x128xbf16, #tpu.memory_space<vmem>>, vector<1x128x128xbf16>
    %81 = vector.shape_cast %80 : vector<1x128x128xbf16> to vector<128x128xbf16>
    %cst_73 = arith.constant dense<0.000000e+00> : vector<32x128xf32>
    %82 = tpu.matmul %79, %81, %cst_73 {dimension_numbers = #tpu.dot_dimension_numbers<[1], [0], [0], [1], [0, 0, 1, 1], [], []>} : vector<32x128xbf16>, vector<128x128xbf16>, vector<32x128xf32> -> vector<32x128xf32>
    %83 = arith.addf %76, %82 : vector<32x128xf32>
    %c0_74 = arith.constant 0 : index
    %c2_75 = arith.constant 2 : index
    %c0_76 = arith.constant 0 : index
    %84 = vector.load %arg12[%c0_74, %c2_75, %c0_76] : memref<2x18x128xf32, #tpu.memory_space<vmem>>, vector<2x16x128xf32>
    %85 = vector.shape_cast %84 : vector<2x16x128xf32> to vector<32x128xf32>
    %86 = arith.truncf %85 : vector<32x128xf32> to vector<32x128xbf16>
    %c2_77 = arith.constant 2 : index
    %c0_78 = arith.constant 0 : index
    %c0_79 = arith.constant 0 : index
    %87 = vector.load %arg8[%c2_77, %c0_78, %c0_79] : memref<3x128x128xbf16, #tpu.memory_space<vmem>>, vector<1x128x128xbf16>
    %88 = vector.shape_cast %87 : vector<1x128x128xbf16> to vector<128x128xbf16>
    %cst_80 = arith.constant dense<0.000000e+00> : vector<32x128xf32>
    %89 = tpu.matmul %86, %88, %cst_80 {dimension_numbers = #tpu.dot_dimension_numbers<[1], [0], [0], [1], [0, 0, 1, 1], [], []>} : vector<32x128xbf16>, vector<128x128xbf16>, vector<32x128xf32> -> vector<32x128xf32>
    %90 = arith.addf %83, %89 : vector<32x128xf32>
    %c0_81 = arith.constant 0 : index
    %c0_82 = arith.constant 0 : index
    %91 = vector.load %arg9[%c0_81, %c0_82] : memref<1x128xf32, #tpu.memory_space<vmem>>, vector<1x128xf32>
    %92 = vector.broadcast %91 : vector<1x128xf32> to vector<32x128xf32>
    %93 = arith.addf %90, %92 : vector<32x128xf32>
    %c0_83 = arith.constant 0 : index
    %c1_84 = arith.constant 1 : index
    %c0_85 = arith.constant 0 : index
    %94 = vector.load %arg1[%c0_83, %c1_84, %c0_85] : memref<2x18x72xf32, #tpu.memory_space<vmem>>, vector<2x16x72xf32>
    %95 = vector.shape_cast %94 : vector<2x16x72xf32> to vector<32x72xf32>
    %96 = arith.truncf %95 : vector<32x72xf32> to vector<32x72xbf16>
    %c0_86 = arith.constant 0 : index
    %c0_87 = arith.constant 0 : index
    %97 = vector.load %arg10[%c0_86, %c0_87] : memref<72x128xbf16, #tpu.memory_space<vmem>>, vector<72x128xbf16>
    %cst_88 = arith.constant dense<0.000000e+00> : vector<32x128xf32>
    %98 = tpu.matmul %96, %97, %cst_88 {dimension_numbers = #tpu.dot_dimension_numbers<[1], [0], [0], [1], [0, 0, 1, 1], [], []>} : vector<32x72xbf16>, vector<72x128xbf16>, vector<32x128xf32> -> vector<32x128xf32>
    %99 = arith.addf %93, %98 : vector<32x128xf32>
    %100 = arith.negf %99 : vector<32x128xf32>
    %101 = math.exp %100 : vector<32x128xf32>
    %cst_89 = arith.constant 1.000000e+00 : f32
    %102 = vector.broadcast %cst_89 : f32 to vector<32x128xf32>
    %103 = arith.addf %102, %101 : vector<32x128xf32>
    %104 = arith.divf %102, %103 : vector<32x128xf32>
    %105 = arith.mulf %99, %104 : vector<32x128xf32>
    %106 = vector.shape_cast %105 : vector<32x128xf32> to vector<2x16x128xf32>
    %c0_90 = arith.constant 0 : index
    %c0_91 = arith.constant 0 : index
    %c0_92 = arith.constant 0 : index
    %107 = vector.load %arg11[%c0_90, %c0_91, %c0_92] : memref<2x16x128xf32, #tpu.memory_space<vmem>>, vector<2x16x128xf32>
    tpu.vector_store %arg11[%c0_90, %c0_91, %c0_92], %106 {strides = array<i32>} : memref<2x16x128xf32, #tpu.memory_space<vmem>>, vector<2x16x128xf32>,
    return
  }
  func.func @transform_0(%arg0: i32) -> (i32, i32, i32) {
    %c0_i32 = arith.constant 0 : i32
    %c0_i32_0 = arith.constant 0 : i32
    %c0_i32_1 = arith.constant 0 : i32
    return %arg0, %c0_i32, %c0_i32_0 : i32, i32, i32
  }
  func.func @transform_1(%arg0: i32) -> (i32, i32, i32) {
    %c0_i32 = arith.constant 0 : i32
    %c0_i32_0 = arith.constant 0 : i32
    %c0_i32_1 = arith.constant 0 : i32
    %c0_i32_2 = arith.constant 0 : i32
    return %c0_i32, %c0_i32_0, %c0_i32_1 : i32, i32, i32
  }
  func.func @transform_2(%arg0: i32) -> (i32, i32) {
    %c0_i32 = arith.constant 0 : i32
    %c0_i32_0 = arith.constant 0 : i32
    %c0_i32_1 = arith.constant 0 : i32
    return %c0_i32, %c0_i32_0 : i32, i32
  }
  func.func @transform_3(%arg0: i32) -> (i32, i32) {
    %c0_i32 = arith.constant 0 : i32
    %c0_i32_0 = arith.constant 0 : i32
    %c0_i32_1 = arith.constant 0 : i32
    return %c0_i32, %c0_i32_0 : i32, i32
  }
  func.func @transform_4(%arg0: i32) -> (i32, i32, i32) {
    %c0_i32 = arith.constant 0 : i32
    %c0_i32_0 = arith.constant 0 : i32
    %c0_i32_1 = arith.constant 0 : i32
    %c0_i32_2 = arith.constant 0 : i32
    return %c0_i32, %c0_i32_0, %c0_i32_1 : i32, i32, i32
  }
  func.func @transform_5(%arg0: i32) -> (i32, i32) {
    %c0_i32 = arith.constant 0 : i32
    %c0_i32_0 = arith.constant 0 : i32
    %c0_i32_1 = arith.constant 0 : i32
    return %c0_i32, %c0_i32_0 : i32, i32
  }
  func.func @transform_6(%arg0: i32) -> (i32, i32) {
    %c0_i32 = arith.constant 0 : i32
    %c0_i32_0 = arith.constant 0 : i32
    %c0_i32_1 = arith.constant 0 : i32
    return %c0_i32, %c0_i32_0 : i32, i32
  }
  func.func @transform_7(%arg0: i32) -> (i32, i32, i32) {
    %c0_i32 = arith.constant 0 : i32
    %c0_i32_0 = arith.constant 0 : i32
    %c0_i32_1 = arith.constant 0 : i32
    %c0_i32_2 = arith.constant 0 : i32
    return %c0_i32, %c0_i32_0, %c0_i32_1 : i32, i32, i32
  }
  func.func @transform_8(%arg0: i32) -> (i32, i32) {
    %c0_i32 = arith.constant 0 : i32
    %c0_i32_0 = arith.constant 0 : i32
    %c0_i32_1 = arith.constant 0 : i32
    return %c0_i32, %c0_i32_0 : i32, i32
  }
  func.func @transform_9(%arg0: i32) -> (i32, i32) {
    %c0_i32 = arith.constant 0 : i32
    %c0_i32_0 = arith.constant 0 : i32
    %c0_i32_1 = arith.constant 0 : i32
    return %c0_i32, %c0_i32_0 : i32, i32
  }
  func.func @transform_10(%arg0: i32) -> (i32, i32, i32) {
    %c0_i32 = arith.constant 0 : i32
    %c0_i32_0 = arith.constant 0 : i32
    %c0_i32_1 = arith.constant 0 : i32
    return %arg0, %c0_i32, %c0_i32_0 : i32, i32, i32
  }
}

</mosaic_0001>

<llo_original>
// kernel: tpu_custom_call.1
$region0: #{tpu_custom_call.1}
  #allocation0 [shape = 'u32[]', space=smem, size = 0x4, offset = 0x4, fixed_abs, tag = 'smem constant byte address 0x4 - core index']
  #allocation1 [shape = 'u32[72,128]{1,0:T(1,128)}', space=vmem, size = 0x9000, scoped, tag = 'internal scratch']
  #allocation2 [shape = 'f32[2,18,128]{2,1,0:T(8,128)}', space=vmem, size = 0x6000, scoped, tag = 'scratch operand']
  %s0 = inlined_call_operand.vmem [shape: f32[2,18,72], index: 0, kind: input, shape index: {}]
  %s1 = inlined_call_operand.hbm [shape: bf16[3,72,128], index: 1, kind: input, shape index: {}]
  %s2 = inlined_call_operand.vmem [shape: f32[1,128], index: 2, kind: input, shape index: {}]
  %s3 = inlined_call_operand.vmem [shape: f32[1,128], index: 3, kind: input, shape index: {}]
  %s4 = inlined_call_operand.hbm [shape: bf16[3,128,128], index: 4, kind: input, shape index: {}]
  %s5 = inlined_call_operand.vmem [shape: f32[1,128], index: 5, kind: input, shape index: {}]
  %s6 = inlined_call_operand.vmem [shape: f32[1,128], index: 6, kind: input, shape index: {}]
  %s7 = inlined_call_operand.hbm [shape: bf16[3,128,128], index: 7, kind: input, shape index: {}]
  %s8 = inlined_call_operand.vmem [shape: f32[1,128], index: 8, kind: input, shape index: {}]
  %s9 = inlined_call_operand.vmem [shape: bf16[72,128], index: 9, kind: input, shape index: {}]
  %s10 = inlined_call_operand.hbm [shape: f32[2,16,128], index: 10, kind: output, shape index: {}]
  %s11 = sld [smem:[#allocation0]]
  $region62: #{tpu_custom_call.1} parent=0
    _
  %s13 = ssub.s32 1, %s11
  %s14 = scalar_select 0, %s13, %s11
  $region1: #{tpu_custom_call.1} parent=0
    #allocation3 [shape = 'u8[55296]{0}', space=vmem, size = 0xd800, scoped, tag = 'input window, operand 1, single buffered']
    #allocation4 [shape = 's32[1]{0}', space=sflag, size = 0x4, scoped, tag = 'scoped memory for tpu_custom_call.1']
    #allocation5 [shape = 's32[1]{0}', space=sflag, size = 0x4, scoped, tag = 'scoped memory for tpu_custom_call.1']
    #allocation6 [shape = 'u8[98304]{0}', space=vmem, size = 0x18000, scoped, tag = 'input window, operand 4, single buffered']
    #allocation7 [shape = 's32[1]{0}', space=sflag, size = 0x4, scoped, tag = 'scoped memory for tpu_custom_call.1']
    #allocation8 [shape = 'u8[98304]{0}', space=vmem, size = 0x18000, scoped, tag = 'input window, operand 7, single buffered']
    #allocation9 [shape = 'u8[16384]{0}', space=vmem, size = 0x4000, scoped, tag = 'output window, operand 0, single buffered']
    %15 = vsyncpa [#allocation4], 0
    %16 = vsyncpa [#allocation7], 0
    %17 = vsyncpa [#allocation5], 0
    // Predicated region
    $region2: #{tpu_custom_call.1} parent=1 // pred_check
      _
    $region3: #{tpu_custom_call.1} parent=1 // pred_check_branch
      %19 = sbr.rel (0) target = $region5
    $region4: #{tpu_custom_call.1} parent=1 // pred_region
      _
    $region5: #{tpu_custom_call.1} parent=1 // pred_fallthru
      _
    // Predicated region
    $region6: #{tpu_custom_call.1} parent=1 // pred_check
      _
    $region7: #{tpu_custom_call.1} parent=1 // pred_check_branch
      %21 = sbr.rel (0) target = $region9
    $region8: #{tpu_custom_call.1} parent=1 // pred_region
      %23 = vsyncadd [#allocation4], 0
      %s24 = sshll.u32 %s1, 4
      %s25 = int_to_ptr.hbm [resolvable:$true] %s24
      %s26 = sshll.u32 [#allocation3], 4
      %s27 = int_to_ptr.vmem [resolvable:$true] %s26
      %32 = dma.hbm_to_vmem [thread:$0]  %s25, 1728, %s27, [#allocation4], 64, 64, 4
    $region9: #{tpu_custom_call.1} parent=1 // pred_fallthru
      _
    // Predicated region
    $region10: #{tpu_custom_call.1} parent=1 // pred_check
      _
    $region11: #{tpu_custom_call.1} parent=1 // pred_check_branch
      %34 = sbr.rel (0) target = $region13
    $region12: #{tpu_custom_call.1} parent=1 // pred_region
      _
    $region13: #{tpu_custom_call.1} parent=1 // pred_fallthru
      _
    // Predicated region
    $region14: #{tpu_custom_call.1} parent=1 // pred_check
      _
    $region15: #{tpu_custom_call.1} parent=1 // pred_check_branch
      %36 = sbr.rel (0) target = $region17
    $region16: #{tpu_custom_call.1} parent=1 // pred_region
      _
    $region17: #{tpu_custom_call.1} parent=1 // pred_fallthru
      _
    // Predicated region
    $region18: #{tpu_custom_call.1} parent=1 // pred_check
      _
    $region19: #{tpu_custom_call.1} parent=1 // pred_check_branch
      %38 = sbr.rel (0) target = $region21
    $region20: #{tpu_custom_call.1} parent=1 // pred_region
      %40 = vsyncadd [#allocation7], 0
      %s41 = sshll.u32 %s4, 4
      %s42 = int_to_ptr.hbm [resolvable:$true] %s41
      %s43 = sshll.u32 [#allocation6], 4
      %s44 = int_to_ptr.vmem [resolvable:$true] %s43
      %49 = dma.hbm_to_vmem [thread:$0]  %s42, 3072, %s44, [#allocation7], 64, 64, 4
    $region21: #{tpu_custom_call.1} parent=1 // pred_fallthru
      _
    // Predicated region
    $region22: #{tpu_custom_call.1} parent=1 // pred_check
      _
    $region23: #{tpu_custom_call.1} parent=1 // pred_check_branch
      %51 = sbr.rel (0) target = $region25
    $region24: #{tpu_custom_call.1} parent=1 // pred_region
      _
    $region25: #{tpu_custom_call.1} parent=1 // pred_fallthru
      _
    // Predicated region
    $region26: #{tpu_custom_call.1} parent=1 // pred_check
      _
    $region27: #{tpu_custom_call.1} parent=1 // pred_check_branch
      %53 = sbr.rel (0) target = $region29
    $region28: #{tpu_custom_call.1} parent=1 // pred_region
      _
    $region29: #{tpu_custom_call.1} parent=1 // pred_fallthru
      _
    // Predicated region
    $region30: #{tpu_custom_call.1} parent=1 // pred_check
      _
    $region31: #{tpu_custom_call.1} parent=1 // pred_check_branch
      %55 = sbr.rel (0) target = $region33
    $region32: #{tpu_custom_call.1} parent=1 // pred_region
      %57 = vsyncadd [#allocation7], 0
      %s58 = sshll.u32 %s7, 4
      %s59 = int_to_ptr.hbm [resolvable:$true] %s58
      %s60 = sshll.u32 [#allocation8], 4
      %s61 = int_to_ptr.vmem [resolvable:$true] %s60
      %66 = dma.hbm_to_vmem [thread:$0]  %s59, 3072, %s61, [#allocation7], 64, 64, 4
    $region33: #{tpu_custom_call.1} parent=1 // pred_fallthru
      _
    // Predicated region
    $region34: #{tpu_custom_call.1} parent=1 // pred_check
      _
    $region35: #{tpu_custom_call.1} parent=1 // pred_check_branch
      %68 = sbr.rel (0) target = $region37
    $region36: #{tpu_custom_call.1} parent=1 // pred_region
      _
    $region37: #{tpu_custom_call.1} parent=1 // pred_fallthru
      _
    // Predicated region
    $region38: #{tpu_custom_call.1} parent=1 // pred_check
      _
    $region39: #{tpu_custom_call.1} parent=1 // pred_check_branch
      %70 = sbr.rel (0) target = $region41
    $region40: #{tpu_custom_call.1} parent=1 // pred_region
      _
    $region41: #{tpu_custom_call.1} parent=1 // pred_fallthru
      _
    // Predicated region
    $region42: #{tpu_custom_call.1} parent=1 // pred_check
      _
    $region43: #{tpu_custom_call.1} parent=1 // pred_check_branch
      %72 = sbr.rel (0) target = $region45
    $region44: #{tpu_custom_call.1} parent=1 // pred_region
      %74 = dma.done [#allocation4], 1728
    $region45: #{tpu_custom_call.1} parent=1 // pred_fallthru
      _
    // Predicated region
    $region46: #{tpu_custom_call.1} parent=1 // pred_check
      _
    $region47: #{tpu_custom_call.1} parent=1 // pred_check_branch
      %76 = sbr.rel (0) target = $region49
    $region48: #{tpu_custom_call.1} parent=1 // pred_region
      %78 = dma.done [#allocation7], 3072
    $region49: #{tpu_custom_call.1} parent=1 // pred_fallthru
      _
    // Predicated region
    $region50: #{tpu_custom_call.1} parent=1 // pred_check
      _
    $region51: #{tpu_custom_call.1} parent=1 // pred_check_branch
      %80 = sbr.rel (0) target = $region53
    $region52: #{tpu_custom_call.1} parent=1 // pred_region
      %82 = dma.done [#allocation7], 3072
    $region53: #{tpu_custom_call.1} parent=1 // pred_fallthru
      _
    %v84 = vld [vmem:[%s0] sm:$0xff]
    %v85 = vld [vmem:[%s0 + $0x8] sm:$0xff]
    %v86 = vld [vmem:[%s0 + $0x18] sm:$0xff]
    %v87 = vld [vmem:[%s0 + $0x20] sm:$0xff]
    %v88 = vpack.c.bf16 %v85, %v84
    %v89 = vpack.c.bf16 %v87, %v86
    %v90 = vld [vmem:[#allocation3] sm:$0xf]
    %v91 = vld [vmem:[#allocation3 + $0x4] sm:$0xf]
    %v92 = vld [vmem:[#allocation3 + $0x8] sm:$0xf]
    %v93 = vld [vmem:[#allocation3 + $0xc] sm:$0xf]
    %v94 = vld [vmem:[#allocation3 + $0x10] sm:$0xf]
    %v95 = vld [vmem:[#allocation3 + $0x14] sm:$0xf]
    %v96 = vld [vmem:[#allocation3 + $0x18] sm:$0xf]
    %v97 = vld [vmem:[#allocation3 + $0x1c] sm:$0xf]
    %v98 = vld [vmem:[#allocation3 + $0x20] sm:$0xf]
    %v99 = vld [vmem:[%s0 + $0x1] sm:$0xff]
    %v100 = vld [vmem:[%s0 + $0x9] sm:$0xff]
    %v101 = vld [vmem:[%s0 + $0x19] sm:$0xff]
    %v102 = vld [vmem:[%s0 + $0x21] sm:$0xff]
    %v103 = vpack.c.bf16 %v100, %v99
    %v104 = vpack.c.bf16 %v102, %v101
    %s105 = scalar_lea.vmem [#allocation3], 36
    %v106 = vld [vmem:[%s105] sm:$0xf]
    %v107 = vld [vmem:[%s105 + $0x4] sm:$0xf]
    %v108 = vld [vmem:[%s105 + $0x8] sm:$0xf]
    %v109 = vld [vmem:[%s105 + $0xc] sm:$0xf]
    %v110 = vld [vmem:[%s105 + $0x10] sm:$0xf]
    %v111 = vld [vmem:[%s105 + $0x14] sm:$0xf]
    %v112 = vld [vmem:[%s105 + $0x18] sm:$0xf]
    %v113 = vld [vmem:[%s105 + $0x1c] sm:$0xf]
    %v114 = vld [vmem:[%s105 + $0x20] sm:$0xf]
    %v124 = vunpack.c.l.b16 %v106
    %v125 = vunpack.c.l.b16 %v107
    %v126 = vunpack.c.l.b16 %v108
    %v127 = vunpack.c.l.b16 %v109
    %v128 = vunpack.c.l.b16 %v110
    %v129 = vunpack.c.l.b16 %v111
    %v130 = vunpack.c.l.b16 %v112
    %v131 = vunpack.c.l.b16 %v113
    %v132 = vunpack.c.l.b16 %v114
    %v133 = vpack.c.b16 %v125, %v124
    %v134 = vpack.c.b16 %v127, %v126
    %v135 = vpack.c.b16 %v129, %v128
    %v136 = vpack.c.b16 %v131, %v130
    %v137 = vpack.c.b16 %v132, %v132
    %vm142 = vcmask 588800
    %v144 = vsel %vm142, %v103, 0
    %v147 = vsel %vm142, %v104, 0
    %vm149 = vcmask 1043456
    %v151 = vsel %vm149, %v137, 0
    %153 = vmatpush.bf16.msra.mxu0 0
    %154 = vmatpush.bf16.msra.mxu0 0
    %155 = vmatpush.bf16.msra.mxu0 0
    %156 = vmatpush.bf16.msra.mxu0 %v151
    %157 = vmatpush.bf16.msra.mxu0 %v136
    %158 = vmatpush.bf16.msra.mxu0 %v135
    %159 = vmatpush.bf16.msra.mxu0 %v134
    %160 = vmatpush.bf16.msra.mxu0 %v133
    %161 = vmatmul.bf16.gmra.mxu0 %v144
    %v162 = vpop.f32.mrf.mxu0
    %v163 = vadd.f32 0.0, %v162
    %v164 = vpop.f32.mrf.mxu0
    %v165 = vadd.f32 0.0, %v164
    %166 = vmatmul.bf16.gmra.mxu0 %v147
    %v167 = vpop.f32.mrf.mxu0
    %v168 = vadd.f32 0.0, %v167
    %v169 = vpop.f32.mrf.mxu0
    %v170 = vadd.f32 0.0, %v169
    %171 = vdwg.mxu0
    %v181 = vunpack.c.l.b16 %v90
    %v182 = vunpack.c.l.b16 %v91
    %v183 = vunpack.c.l.b16 %v92
    %v184 = vunpack.c.l.b16 %v93
    %v185 = vunpack.c.l.b16 %v94
    %v186 = vunpack.c.l.b16 %v95
    %v187 = vunpack.c.l.b16 %v96
    %v188 = vunpack.c.l.b16 %v97
    %v189 = vunpack.c.l.b16 %v98
    %v190 = vpack.c.b16 %v182, %v181
    %v191 = vpack.c.b16 %v184, %v183
    %v192 = vpack.c.b16 %v186, %v185
    %v193 = vpack.c.b16 %v188, %v187
    %v194 = vpack.c.b16 %v189, %v189
    %v200 = vsel %vm142, %v88, 0
    %v203 = vsel %vm142, %v89, 0
    %v206 = vsel %vm149, %v194, 0
    %208 = vmatpush.bf16.msra.mxu0 0
    %209 = vmatpush.bf16.msra.mxu0 0
    %210 = vmatpush.bf16.msra.mxu0 0
    %211 = vmatpush.bf16.msra.mxu0 %v206
    %212 = vmatpush.bf16.msra.mxu0 %v193
    %213 = vmatpush.bf16.msra.mxu0 %v192
    %214 = vmatpush.bf16.msra.mxu0 %v191
    %215 = vmatpush.bf16.msra.mxu0 %v190
    %216 = vmatmul.bf16.gmra.mxu0 %v200
    %v217 = vpop.f32.mrf.mxu0
    %v218 = vadd.f32 %v163, %v217
    %v219 = vpop.f32.mrf.mxu0
    %v220 = vadd.f32 %v165, %v219
    %221 = vmatmul.bf16.gmra.mxu0 %v203
    %v222 = vpop.f32.mrf.mxu0
    %v223 = vadd.f32 %v168, %v222
    %v224 = vpop.f32.mrf.mxu0
    %v225 = vadd.f32 %v170, %v224
    %226 = vdwg.mxu0
    %v227 = vld [vmem:[%s0 + $0x2] sm:$0xff]
    %v228 = vld [vmem:[%s0 + $0xa] sm:$0xff]
    %v229 = vld [vmem:[%s0 + $0x1a] sm:$0xff]
    %v230 = vld [vmem:[%s0 + $0x22] sm:$0xff]
    %v231 = vpack.c.bf16 %v228, %v227
    %v232 = vpack.c.bf16 %v230, %v229
    %s233 = scalar_lea.vmem [#allocation3], 72
    %v234 = vld [vmem:[%s233] sm:$0xf]
    %v235 = vld [vmem:[%s233 + $0x4] sm:$0xf]
    %v236 = vld [vmem:[%s233 + $0x8] sm:$0xf]
    %v237 = vld [vmem:[%s233 + $0xc] sm:$0xf]
    %v238 = vld [vmem:[%s233 + $0x10] sm:$0xf]
    %v239 = vld [vmem:[%s233 + $0x14] sm:$0xf]
    %v240 = vld [vmem:[%s233 + $0x18] sm:$0xf]
    %v241 = vld [vmem:[%s233 + $0x1c] sm:$0xf]
    %v242 = vld [vmem:[%s233 + $0x20] sm:$0xf]
    %v252 = vunpack.c.l.b16 %v234
    %v253 = vunpack.c.l.b16 %v235
    %v254 = vunpack.c.l.b16 %v236
    %v255 = vunpack.c.l.b16 %v237
    %v256 = vunpack.c.l.b16 %v238
    %v257 = vunpack.c.l.b16 %v239
    %v258 = vunpack.c.l.b16 %v240
    %v259 = vunpack.c.l.b16 %v241
    %v260 = vunpack.c.l.b16 %v242
    %v261 = vpack.c.b16 %v253, %v252
    %v262 = vpack.c.b16 %v255, %v254
    %v263 = vpack.c.b16 %v257, %v256
    %v264 = vpack.c.b16 %v259, %v258
    %v265 = vpack.c.b16 %v260, %v260
    %v271 = vsel %vm142, %v231, 0
    %v274 = vsel %vm142, %v232, 0
    %v277 = vsel %vm149, %v265, 0
    %279 = vmatpush.bf16.msra.mxu0 0
    %280 = vmatpush.bf16.msra.mxu0 0
    %281 = vmatpush.bf16.msra.mxu0 0
    %282 = vmatpush.bf16.msra.mxu0 %v277
    %283 = vmatpush.bf16.msra.mxu0 %v264
    %284 = vmatpush.bf16.msra.mxu0 %v263
    %285 = vmatpush.bf16.msra.mxu0 %v262
    %286 = vmatpush.bf16.msra.mxu0 %v261
    %287 = vmatmul.bf16.gmra.mxu0 %v271
    %v288 = vpop.f32.mrf.mxu0
    %v289 = vadd.f32 0.0, %v288
    %v290 = vpop.f32.mrf.mxu0
    %v291 = vadd.f32 0.0, %v290
    %292 = vmatmul.bf16.gmra.mxu0 %v274
    %v293 = vpop.f32.mrf.mxu0
    %v294 = vadd.f32 0.0, %v293
    %v295 = vpop.f32.mrf.mxu0
    %v296 = vadd.f32 0.0, %v295
    %297 = vdwg.mxu0
    %v298 = vadd.f32 %v218, %v289
    %v299 = vadd.f32 %v220, %v291
    %v300 = vadd.f32 %v223, %v294
    %v301 = vadd.f32 %v225, %v296
    %v302 = vld [vmem:[%s2] sm:$0x1]
    %v304 = vperm.slane %v302, 0
    %v306 = vmul.f32 %v298, %v304
    %v307 = vmul.f32 %v299, %v304
    %v308 = vmul.f32 %v300, %v304
    %v309 = vmul.f32 %v301, %v304
    %v310 = vld [vmem:[%s3] sm:$0x1]
    %v312 = vperm.slane %v310, 0
    %v314 = vadd.f32 %v306, %v312
    %v315 = vadd.f32 %v307, %v312
    %v316 = vadd.f32 %v308, %v312
    %v317 = vadd.f32 %v309, %v312
    %v318 = vxor.u32 %v314, 2147483648
    %v319 = vxor.u32 %v315, 2147483648
    %v320 = vxor.u32 %v316, 2147483648
    %v321 = vxor.u32 %v317, 2147483648
    %v322 = vmul.f32 %v318, 1.442695
    %v323 = vpow.pop %v322
    %v324 = vmul.f32 %v319, 1.442695
    %v325 = vpow.pop %v324
    %v326 = vmul.f32 %v320, 1.442695
    %v327 = vpow.pop %v326
    %v328 = vmul.f32 %v321, 1.442695
    %v329 = vpow.pop %v328
    %v330 = vadd.f32 %v323, 1.0
    %v331 = vadd.f32 %v325, 1.0
    %v332 = vadd.f32 %v327, 1.0
    %v333 = vadd.f32 %v329, 1.0
    %v334 = vrcp.pop %v330
    %v335 = vmul.f32 %v330, %v334
    %v336 = vsub.f32 1.0, %v335
    %v337 = vmul.f32 %v334, %v336
    %v338 = vadd.f32 %v334, %v337
    %vm339 = vweird.f32 %v330
    %vm340 = vweird.f32 %v334
    %vm341 = vmor %vm339, %vm340
    %v342 = vsel %vm341, %v334, %v338
    %v343 = vand.u32 2147483647, %v330
    %vm344 = vcmp.eq.f32.partialorder %v343, 8.507059e+37
    %v345 = vand.u32 %v330, 2147483648
    %v346 = vor.u32 1.1754944e-38, %v345
    %v347 = vsel %vm344, %v346, %v342
    %v348 = vmul.f32 1.0, %v347
    %v349 = vrcp.pop %v331
    %v350 = vmul.f32 %v331, %v349
    %v351 = vsub.f32 1.0, %v350
    %v352 = vmul.f32 %v349, %v351
    %v353 = vadd.f32 %v349, %v352
    %vm354 = vweird.f32 %v331
    %vm355 = vweird.f32 %v349
    %vm356 = vmor %vm354, %vm355
    %v357 = vsel %vm356, %v349, %v353
    %v358 = vand.u32 2147483647, %v331
    %vm359 = vcmp.eq.f32.partialorder %v358, 8.507059e+37
    %v360 = vand.u32 %v331, 2147483648
    %v361 = vor.u32 1.1754944e-38, %v360
    %v362 = vsel %vm359, %v361, %v357
    %v363 = vmul.f32 1.0, %v362
    %v364 = vrcp.pop %v332
    %v365 = vmul.f32 %v332, %v364
    %v366 = vsub.f32 1.0, %v365
    %v367 = vmul.f32 %v364, %v366
    %v368 = vadd.f32 %v364, %v367
    %vm369 = vweird.f32 %v332
    %vm370 = vweird.f32 %v364
    %vm371 = vmor %vm369, %vm370
    %v372 = vsel %vm371, %v364, %v368
    %v373 = vand.u32 2147483647, %v332
    %vm374 = vcmp.eq.f32.partialorder %v373, 8.507059e+37
    %v375 = vand.u32 %v332, 2147483648
    %v376 = vor.u32 1.1754944e-38, %v375
    %v377 = vsel %vm374, %v376, %v372
    %v378 = vmul.f32 1.0, %v377
    %v379 = vrcp.pop %v333
    %v380 = vmul.f32 %v333, %v379
    %v381 = vsub.f32 1.0, %v380
    %v382 = vmul.f32 %v379, %v381
    %v383 = vadd.f32 %v379, %v382
    %vm384 = vweird.f32 %v333
    %vm385 = vweird.f32 %v379
    %vm386 = vmor %vm384, %vm385
    %v387 = vsel %vm386, %v379, %v383
    %v388 = vand.u32 2147483647, %v333
    %vm389 = vcmp.eq.f32.partialorder %v388, 8.507059e+37
    %v390 = vand.u32 %v333, 2147483648
    %v391 = vor.u32 1.1754944e-38, %v390
    %v392 = vsel %vm389, %v391, %v387
    %v393 = vmul.f32 1.0, %v392
    %v394 = vmul.f32 %v314, %v348
    %v395 = vmul.f32 %v315, %v363
    %v396 = vmul.f32 %v316, %v378
    %v397 = vmul.f32 %v317, %v393
    %398 = vst [vmem:[#allocation2] sm:$0x1] 0.0
    %399 = vst [vmem:[#allocation2 + $0x18] sm:$0x1] 0.0
    %400 = vst [vmem:[#allocation2 + $0x11] sm:$0x1] 0.0
    %401 = vst [vmem:[#allocation2 + $0x29] sm:$0x1] 0.0
    %402 = vst [vmem:[#allocation2 + $0x1] sm:$0xff] %v394
    %403 = vst [vmem:[#allocation2 + $0x9] sm:$0xff] %v395
    %404 = vst [vmem:[#allocation2 + $0x19] sm:$0xff] %v396
    %405 = vst [vmem:[#allocation2 + $0x21] sm:$0xff] %v397
    %v406 = vld [vmem:[#allocation2] sm:$0xff]
    %v407 = vld [vmem:[#allocation2 + $0x8] sm:$0xff]
    %v408 = vld [vmem:[#allocation2 + $0x18] sm:$0xff]
    %v409 = vld [vmem:[#allocation2 + $0x20] sm:$0xff]
    %v410 = vpack.c.bf16 %v407, %v406
    %v411 = vpack.c.bf16 %v409, %v408
    %v412 = vld [vmem:[#allocation6] sm:$0xf]
    %v413 = vld [vmem:[#allocation6 + $0x4] sm:$0xf]
    %v414 = vld [vmem:[#allocation6 + $0x8] sm:$0xf]
    %v415 = vld [vmem:[#allocation6 + $0xc] sm:$0xf]
    %v416 = vld [vmem:[#allocation6 + $0x10] sm:$0xf]
    %v417 = vld [vmem:[#allocation6 + $0x14] sm:$0xf]
    %v418 = vld [vmem:[#allocation6 + $0x18] sm:$0xf]
    %v419 = vld [vmem:[#allocation6 + $0x1c] sm:$0xf]
    %v420 = vld [vmem:[#allocation6 + $0x20] sm:$0xf]
    %v421 = vld [vmem:[#allocation6 + $0x24] sm:$0xf]
    %v422 = vld [vmem:[#allocation6 + $0x28] sm:$0xf]
    %v423 = vld [vmem:[#allocation6 + $0x2c] sm:$0xf]
    %v424 = vld [vmem:[#allocation6 + $0x30] sm:$0xf]
    %v425 = vld [vmem:[#allocation6 + $0x34] sm:$0xf]
    %v426 = vld [vmem:[#allocation6 + $0x38] sm:$0xf]
    %v427 = vld [vmem:[#allocation6 + $0x3c] sm:$0xf]
    %v428 = vld [vmem:[#allocation2 + $0x1] sm:$0xff]
    %v429 = vld [vmem:[#allocation2 + $0x9] sm:$0xff]
    %v430 = vld [vmem:[#allocation2 + $0x19] sm:$0xff]
    %v431 = vld [vmem:[#allocation2 + $0x21] sm:$0xff]
    %v432 = vpack.c.bf16 %v429, %v428
    %v433 = vpack.c.bf16 %v431, %v430
    %s434 = scalar_lea.vmem [#allocation6], 64
    %v435 = vld [vmem:[%s434] sm:$0xf]
    %v436 = vld [vmem:[%s434 + $0x4] sm:$0xf]
    %v437 = vld [vmem:[%s434 + $0x8] sm:$0xf]
    %v438 = vld [vmem:[%s434 + $0xc] sm:$0xf]
    %v439 = vld [vmem:[%s434 + $0x10] sm:$0xf]
    %v440 = vld [vmem:[%s434 + $0x14] sm:$0xf]
    %v441 = vld [vmem:[%s434 + $0x18] sm:$0xf]
    %v442 = vld [vmem:[%s434 + $0x1c] sm:$0xf]
    %v443 = vld [vmem:[%s434 + $0x20] sm:$0xf]
    %v444 = vld [vmem:[%s434 + $0x24] sm:$0xf]
    %v445 = vld [vmem:[%s434 + $0x28] sm:$0xf]
    %v446 = vld [vmem:[%s434 + $0x2c] sm:$0xf]
    %v447 = vld [vmem:[%s434 + $0x30] sm:$0xf]
    %v448 = vld [vmem:[%s434 + $0x34] sm:$0xf]
    %v449 = vld [vmem:[%s434 + $0x38] sm:$0xf]
    %v450 = vld [vmem:[%s434 + $0x3c] sm:$0xf]
    %v467 = vunpack.c.l.b16 %v435
    %v468 = vunpack.c.l.b16 %v436
    %v469 = vunpack.c.l.b16 %v437
    %v470 = vunpack.c.l.b16 %v438
    %v471 = vunpack.c.l.b16 %v439
    %v472 = vunpack.c.l.b16 %v440
    %v473 = vunpack.c.l.b16 %v441
    %v474 = vunpack.c.l.b16 %v442
    %v475 = vunpack.c.l.b16 %v443
    %v476 = vunpack.c.l.b16 %v444
    %v477 = vunpack.c.l.b16 %v445
    %v478 = vunpack.c.l.b16 %v446
    %v479 = vunpack.c.l.b16 %v447
    %v480 = vunpack.c.l.b16 %v448
    %v481 = vunpack.c.l.b16 %v449
    %v482 = vunpack.c.l.b16 %v450
    %v483 = vpack.c.b16 %v468, %v467
    %v484 = vpack.c.b16 %v470, %v469
    %v485 = vpack.c.b16 %v472, %v471
    %v486 = vpack.c.b16 %v474, %v473
    %v487 = vpack.c.b16 %v476, %v475
    %v488 = vpack.c.b16 %v478, %v477
    %v489 = vpack.c.b16 %v480, %v479
    %v490 = vpack.c.b16 %v482, %v481
    %499 = vmatpush.bf16.msra.mxu0 %v490
    %500 = vmatpush.bf16.msra.mxu0 %v489
    %501 = vmatpush.bf16.msra.mxu0 %v488
    %502 = vmatpush.bf16.msra.mxu0 %v487
    %503 = vmatpush.bf16.msra.mxu0 %v486
    %504 = vmatpush.bf16.msra.mxu0 %v485
    %505 = vmatpush.bf16.msra.mxu0 %v484
    %506 = vmatpush.bf16.msra.mxu0 %v483
    %507 = vmatmul.bf16.gmra.mxu0 %v432
    %v508 = vpop.f32.mrf.mxu0
    %v509 = vadd.f32 0.0, %v508
    %v510 = vpop.f32.mrf.mxu0
    %v511 = vadd.f32 0.0, %v510
    %512 = vmatmul.bf16.gmra.mxu0 %v433
    %v513 = vpop.f32.mrf.mxu0
    %v514 = vadd.f32 0.0, %v513
    %v515 = vpop.f32.mrf.mxu0
    %v516 = vadd.f32 0.0, %v515
    %517 = vdwg.mxu0
    %v534 = vunpack.c.l.b16 %v412
    %v535 = vunpack.c.l.b16 %v413
    %v536 = vunpack.c.l.b16 %v414
    %v537 = vunpack.c.l.b16 %v415
    %v538 = vunpack.c.l.b16 %v416
    %v539 = vunpack.c.l.b16 %v417
    %v540 = vunpack.c.l.b16 %v418
    %v541 = vunpack.c.l.b16 %v419
    %v542 = vunpack.c.l.b16 %v420
    %v543 = vunpack.c.l.b16 %v421
    %v544 = vunpack.c.l.b16 %v422
    %v545 = vunpack.c.l.b16 %v423
    %v546 = vunpack.c.l.b16 %v424
    %v547 = vunpack.c.l.b16 %v425
    %v548 = vunpack.c.l.b16 %v426
    %v549 = vunpack.c.l.b16 %v427
    %v550 = vpack.c.b16 %v535, %v534
    %v551 = vpack.c.b16 %v537, %v536
    %v552 = vpack.c.b16 %v539, %v538
    %v553 = vpack.c.b16 %v541, %v540
    %v554 = vpack.c.b16 %v543, %v542
    %v555 = vpack.c.b16 %v545, %v544
    %v556 = vpack.c.b16 %v547, %v546
    %v557 = vpack.c.b16 %v549, %v548
    %566 = vmatpush.bf16.msra.mxu0 %v557
    %567 = vmatpush.bf16.msra.mxu0 %v556
    %568 = vmatpush.bf16.msra.mxu0 %v555
    %569 = vmatpush.bf16.msra.mxu0 %v554
    %570 = vmatpush.bf16.msra.mxu0 %v553
    %571 = vmatpush.bf16.msra.mxu0 %v552
    %572 = vmatpush.bf16.msra.mxu0 %v551
    %573 = vmatpush.bf16.msra.mxu0 %v550
    %574 = vmatmul.bf16.gmra.mxu0 %v410
    %v575 = vpop.f32.mrf.mxu0
    %v576 = vadd.f32 %v509, %v575
    %v577 = vpop.f32.mrf.mxu0
    %v578 = vadd.f32 %v511, %v577
    %579 = vmatmul.bf16.gmra.mxu0 %v411
    %v580 = vpop.f32.mrf.mxu0
    %v581 = vadd.f32 %v514, %v580
    %v582 = vpop.f32.mrf.mxu0
    %v583 = vadd.f32 %v516, %v582
    %584 = vdwg.mxu0
    %v585 = vld [vmem:[#allocation2 + $0x2] sm:$0xff]
    %v586 = vld [vmem:[#allocation2 + $0xa] sm:$0xff]
    %v587 = vld [vmem:[#allocation2 + $0x1a] sm:$0xff]
    %v588 = vld [vmem:[#allocation2 + $0x22] sm:$0xff]
    %v589 = vpack.c.bf16 %v586, %v585
    %v590 = vpack.c.bf16 %v588, %v587
    %s591 = scalar_lea.vmem [#allocation6], 128
    %v592 = vld [vmem:[%s591] sm:$0xf]
    %v593 = vld [vmem:[%s591 + $0x4] sm:$0xf]
    %v594 = vld [vmem:[%s591 + $0x8] sm:$0xf]
    %v595 = vld [vmem:[%s591 + $0xc] sm:$0xf]
    %v596 = vld [vmem:[%s591 + $0x10] sm:$0xf]
    %v597 = vld [vmem:[%s591 + $0x14] sm:$0xf]
    %v598 = vld [vmem:[%s591 + $0x18] sm:$0xf]
    %v599 = vld [vmem:[%s591 + $0x1c] sm:$0xf]
    %v600 = vld [vmem:[%s591 + $0x20] sm:$0xf]
    %v601 = vld [vmem:[%s591 + $0x24] sm:$0xf]
    %v602 = vld [vmem:[%s591 + $0x28] sm:$0xf]
    %v603 = vld [vmem:[%s591 + $0x2c] sm:$0xf]
    %v604 = vld [vmem:[%s591 + $0x30] sm:$0xf]
    %v605 = vld [vmem:[%s591 + $0x34] sm:$0xf]
    %v606 = vld [vmem:[%s591 + $0x38] sm:$0xf]
    %v607 = vld [vmem:[%s591 + $0x3c] sm:$0xf]
    %v624 = vunpack.c.l.b16 %v592
    %v625 = vunpack.c.l.b16 %v593
    %v626 = vunpack.c.l.b16 %v594
    %v627 = vunpack.c.l.b16 %v595
    %v628 = vunpack.c.l.b16 %v596
    %v629 = vunpack.c.l.b16 %v597
    %v630 = vunpack.c.l.b16 %v598
    %v631 = vunpack.c.l.b16 %v599
    %v632 = vunpack.c.l.b16 %v600
    %v633 = vunpack.c.l.b16 %v601
    %v634 = vunpack.c.l.b16 %v602
    %v635 = vunpack.c.l.b16 %v603
    %v636 = vunpack.c.l.b16 %v604
    %v637 = vunpack.c.l.b16 %v605
    %v638 = vunpack.c.l.b16 %v606
    %v639 = vunpack.c.l.b16 %v607
    %v640 = vpack.c.b16 %v625, %v624
    %v641 = vpack.c.b16 %v627, %v626
    %v642 = vpack.c.b16 %v629, %v628
    %v643 = vpack.c.b16 %v631, %v630
    %v644 = vpack.c.b16 %v633, %v632
    %v645 = vpack.c.b16 %v635, %v634
    %v646 = vpack.c.b16 %v637, %v636
    %v647 = vpack.c.b16 %v639, %v638
    %656 = vmatpush.bf16.msra.mxu0 %v647
    %657 = vmatpush.bf16.msra.mxu0 %v646
    %658 = vmatpush.bf16.msra.mxu0 %v645
    %659 = vmatpush.bf16.msra.mxu0 %v644
    %660 = vmatpush.bf16.msra.mxu0 %v643
    %661 = vmatpush.bf16.msra.mxu0 %v642
    %662 = vmatpush.bf16.msra.mxu0 %v641
    %663 = vmatpush.bf16.msra.mxu0 %v640
    %664 = vmatmul.bf16.gmra.mxu0 %v589
    %v665 = vpop.f32.mrf.mxu0
    %v666 = vadd.f32 0.0, %v665
    %v667 = vpop.f32.mrf.mxu0
    %v668 = vadd.f32 0.0, %v667
    %669 = vmatmul.bf16.gmra.mxu0 %v590
    %v670 = vpop.f32.mrf.mxu0
    %v671 = vadd.f32 0.0, %v670
    %v672 = vpop.f32.mrf.mxu0
    %v673 = vadd.f32 0.0, %v672
    %674 = vdwg.mxu0
    %v675 = vadd.f32 %v576, %v666
    %v676 = vadd.f32 %v578, %v668
    %v677 = vadd.f32 %v581, %v671
    %v678 = vadd.f32 %v583, %v673
    %v679 = vld [vmem:[%s5] sm:$0x1]
    %v681 = vperm.slane %v679, 0
    %v683 = vmul.f32 %v675, %v681
    %v684 = vmul.f32 %v676, %v681
    %v685 = vmul.f32 %v677, %v681
    %v686 = vmul.f32 %v678, %v681
    %v687 = vld [vmem:[%s6] sm:$0x1]
    %v689 = vperm.slane %v687, 0
    %v691 = vadd.f32 %v683, %v689
    %v692 = vadd.f32 %v684, %v689
    %v693 = vadd.f32 %v685, %v689
    %v694 = vadd.f32 %v686, %v689
    %v695 = vxor.u32 %v691, 2147483648
    %v696 = vxor.u32 %v692, 2147483648
    %v697 = vxor.u32 %v693, 2147483648
    %v698 = vxor.u32 %v694, 2147483648
    %v699 = vmul.f32 %v695, 1.442695
    %v700 = vpow.pop %v699
    %v701 = vmul.f32 %v696, 1.442695
    %v702 = vpow.pop %v701
    %v703 = vmul.f32 %v697, 1.442695
    %v704 = vpow.pop %v703
    %v705 = vmul.f32 %v698, 1.442695
    %v706 = vpow.pop %v705
    %v707 = vadd.f32 %v700, 1.0
    %v708 = vadd.f32 %v702, 1.0
    %v709 = vadd.f32 %v704, 1.0
    %v710 = vadd.f32 %v706, 1.0
    %v711 = vrcp.pop %v707
    %v712 = vmul.f32 %v707, %v711
    %v713 = vsub.f32 1.0, %v712
    %v714 = vmul.f32 %v711, %v713
    %v715 = vadd.f32 %v711, %v714
    %vm716 = vweird.f32 %v707
    %vm717 = vweird.f32 %v711
    %vm718 = vmor %vm716, %vm717
    %v719 = vsel %vm718, %v711, %v715
    %v720 = vand.u32 2147483647, %v707
    %vm721 = vcmp.eq.f32.partialorder %v720, 8.507059e+37
    %v722 = vand.u32 %v707, 2147483648
    %v723 = vor.u32 1.1754944e-38, %v722
    %v724 = vsel %vm721, %v723, %v719
    %v725 = vmul.f32 1.0, %v724
    %v726 = vrcp.pop %v708
    %v727 = vmul.f32 %v708, %v726
    %v728 = vsub.f32 1.0, %v727
    %v729 = vmul.f32 %v726, %v728
    %v730 = vadd.f32 %v726, %v729
    %vm731 = vweird.f32 %v708
    %vm732 = vweird.f32 %v726
    %vm733 = vmor %vm731, %vm732
    %v734 = vsel %vm733, %v726, %v730
    %v735 = vand.u32 2147483647, %v708
    %vm736 = vcmp.eq.f32.partialorder %v735, 8.507059e+37
    %v737 = vand.u32 %v708, 2147483648
    %v738 = vor.u32 1.1754944e-38, %v737
    %v739 = vsel %vm736, %v738, %v734
    %v740 = vmul.f32 1.0, %v739
    %v741 = vrcp.pop %v709
    %v742 = vmul.f32 %v709, %v741
    %v743 = vsub.f32 1.0, %v742
    %v744 = vmul.f32 %v741, %v743
    %v745 = vadd.f32 %v741, %v744
    %vm746 = vweird.f32 %v709
    %vm747 = vweird.f32 %v741
    %vm748 = vmor %vm746, %vm747
    %v749 = vsel %vm748, %v741, %v745
    %v750 = vand.u32 2147483647, %v709
    %vm751 = vcmp.eq.f32.partialorder %v750, 8.507059e+37
    %v752 = vand.u32 %v709, 2147483648
    %v753 = vor.u32 1.1754944e-38, %v752
    %v754 = vsel %vm751, %v753, %v749
    %v755 = vmul.f32 1.0, %v754
    %v756 = vrcp.pop %v710
    %v757 = vmul.f32 %v710, %v756
    %v758 = vsub.f32 1.0, %v757
    %v759 = vmul.f32 %v756, %v758
    %v760 = vadd.f32 %v756, %v759
    %vm761 = vweird.f32 %v710
    %vm762 = vweird.f32 %v756
    %vm763 = vmor %vm761, %vm762
    %v764 = vsel %vm763, %v756, %v760
    %v765 = vand.u32 2147483647, %v710
    %vm766 = vcmp.eq.f32.partialorder %v765, 8.507059e+37
    %v767 = vand.u32 %v710, 2147483648
    %v768 = vor.u32 1.1754944e-38, %v767
    %v769 = vsel %vm766, %v768, %v764
    %v770 = vmul.f32 1.0, %v769
    %v771 = vmul.f32 %v691, %v725
    %v772 = vmul.f32 %v692, %v740
    %v773 = vmul.f32 %v693, %v755
    %v774 = vmul.f32 %v694, %v770
    %775 = vst [vmem:[#allocation2 + $0x1] sm:$0xff] %v771
    %776 = vst [vmem:[#allocation2 + $0x9] sm:$0xff] %v772
    %777 = vst [vmem:[#allocation2 + $0x19] sm:$0xff] %v773
    %778 = vst [vmem:[#allocation2 + $0x21] sm:$0xff] %v774
    %v779 = vld [vmem:[#allocation2] sm:$0xff]
    %v780 = vld [vmem:[#allocation2 + $0x8] sm:$0xff]
    %v781 = vld [vmem:[#allocation2 + $0x18] sm:$0xff]
    %v782 = vld [vmem:[#allocation2 + $0x20] sm:$0xff]
    %v783 = vpack.c.bf16 %v780, %v779
    %v784 = vpack.c.bf16 %v782, %v781
    %v785 = vld [vmem:[#allocation8] sm:$0xf]
    %v786 = vld [vmem:[#allocation8 + $0x4] sm:$0xf]
    %v787 = vld [vmem:[#allocation8 + $0x8] sm:$0xf]
    %v788 = vld [vmem:[#allocation8 + $0xc] sm:$0xf]
    %v789 = vld [vmem:[#allocation8 + $0x10] sm:$0xf]
    %v790 = vld [vmem:[#allocation8 + $0x14] sm:$0xf]
    %v791 = vld [vmem:[#allocation8 + $0x18] sm:$0xf]
    %v792 = vld [vmem:[#allocation8 + $0x1c] sm:$0xf]
    %v793 = vld [vmem:[#allocation8 + $0x20] sm:$0xf]
    %v794 = vld [vmem:[#allocation8 + $0x24] sm:$0xf]
    %v795 = vld [vmem:[#allocation8 + $0x28] sm:$0xf]
    %v796 = vld [vmem:[#allocation8 + $0x2c] sm:$0xf]
    %v797 = vld [vmem:[#allocation8 + $0x30] sm:$0xf]
    %v798 = vld [vmem:[#allocation8 + $0x34] sm:$0xf]
    %v799 = vld [vmem:[#allocation8 + $0x38] sm:$0xf]
    %v800 = vld [vmem:[#allocation8 + $0x3c] sm:$0xf]
    %v801 = vld [vmem:[#allocation2 + $0x1] sm:$0xff]
    %v802 = vld [vmem:[#allocation2 + $0x9] sm:$0xff]
    %v803 = vld [vmem:[#allocation2 + $0x19] sm:$0xff]
    %v804 = vld [vmem:[#allocation2 + $0x21] sm:$0xff]
    %v805 = vpack.c.bf16 %v802, %v801
    %v806 = vpack.c.bf16 %v804, %v803
    %s807 = scalar_lea.vmem [#allocation8], 64
    %v808 = vld [vmem:[%s807] sm:$0xf]
    %v809 = vld [vmem:[%s807 + $0x4] sm:$0xf]
    %v810 = vld [vmem:[%s807 + $0x8] sm:$0xf]
    %v811 = vld [vmem:[%s807 + $0xc] sm:$0xf]
    %v812 = vld [vmem:[%s807 + $0x10] sm:$0xf]
    %v813 = vld [vmem:[%s807 + $0x14] sm:$0xf]
    %v814 = vld [vmem:[%s807 + $0x18] sm:$0xf]
    %v815 = vld [vmem:[%s807 + $0x1c] sm:$0xf]
    %v816 = vld [vmem:[%s807 + $0x20] sm:$0xf]
    %v817 = vld [vmem:[%s807 + $0x24] sm:$0xf]
    %v818 = vld [vmem:[%s807 + $0x28] sm:$0xf]
    %v819 = vld [vmem:[%s807 + $0x2c] sm:$0xf]
    %v820 = vld [vmem:[%s807 + $0x30] sm:$0xf]
    %v821 = vld [vmem:[%s807 + $0x34] sm:$0xf]
    %v822 = vld [vmem:[%s807 + $0x38] sm:$0xf]
    %v823 = vld [vmem:[%s807 + $0x3c] sm:$0xf]
    %v840 = vunpack.c.l.b16 %v808
    %v841 = vunpack.c.l.b16 %v809
    %v842 = vunpack.c.l.b16 %v810
    %v843 = vunpack.c.l.b16 %v811
    %v844 = vunpack.c.l.b16 %v812
    %v845 = vunpack.c.l.b16 %v813
    %v846 = vunpack.c.l.b16 %v814
    %v847 = vunpack.c.l.b16 %v815
    %v848 = vunpack.c.l.b16 %v816
    %v849 = vunpack.c.l.b16 %v817
    %v850 = vunpack.c.l.b16 %v818
    %v851 = vunpack.c.l.b16 %v819
    %v852 = vunpack.c.l.b16 %v820
    %v853 = vunpack.c.l.b16 %v821
    %v854 = vunpack.c.l.b16 %v822
    %v855 = vunpack.c.l.b16 %v823
    %v856 = vpack.c.b16 %v841, %v840
    %v857 = vpack.c.b16 %v843, %v842
    %v858 = vpack.c.b16 %v845, %v844
    %v859 = vpack.c.b16 %v847, %v846
    %v860 = vpack.c.b16 %v849, %v848
    %v861 = vpack.c.b16 %v851, %v850
    %v862 = vpack.c.b16 %v853, %v852
    %v863 = vpack.c.b16 %v855, %v854
    %872 = vmatpush.bf16.msra.mxu0 %v863
    %873 = vmatpush.bf16.msra.mxu0 %v862
    %874 = vmatpush.bf16.msra.mxu0 %v861
    %875 = vmatpush.bf16.msra.mxu0 %v860
    %876 = vmatpush.bf16.msra.mxu0 %v859
    %877 = vmatpush.bf16.msra.mxu0 %v858
    %878 = vmatpush.bf16.msra.mxu0 %v857
    %879 = vmatpush.bf16.msra.mxu0 %v856
    %880 = vmatmul.bf16.gmra.mxu0 %v805
    %v881 = vpop.f32.mrf.mxu0
    %v882 = vadd.f32 0.0, %v881
    %v883 = vpop.f32.mrf.mxu0
    %v884 = vadd.f32 0.0, %v883
    %885 = vmatmul.bf16.gmra.mxu0 %v806
    %v886 = vpop.f32.mrf.mxu0
    %v887 = vadd.f32 0.0, %v886
    %v888 = vpop.f32.mrf.mxu0
    %v889 = vadd.f32 0.0, %v888
    %890 = vdwg.mxu0
    %v907 = vunpack.c.l.b16 %v785
    %v908 = vunpack.c.l.b16 %v786
    %v909 = vunpack.c.l.b16 %v787
    %v910 = vunpack.c.l.b16 %v788
    %v911 = vunpack.c.l.b16 %v789
    %v912 = vunpack.c.l.b16 %v790
    %v913 = vunpack.c.l.b16 %v791
    %v914 = vunpack.c.l.b16 %v792
    %v915 = vunpack.c.l.b16 %v793
    %v916 = vunpack.c.l.b16 %v794
    %v917 = vunpack.c.l.b16 %v795
    %v918 = vunpack.c.l.b16 %v796
    %v919 = vunpack.c.l.b16 %v797
    %v920 = vunpack.c.l.b16 %v798
    %v921 = vunpack.c.l.b16 %v799
    %v922 = vunpack.c.l.b16 %v800
    %v923 = vpack.c.b16 %v908, %v907
    %v924 = vpack.c.b16 %v910, %v909
    %v925 = vpack.c.b16 %v912, %v911
    %v926 = vpack.c.b16 %v914, %v913
    %v927 = vpack.c.b16 %v916, %v915
    %v928 = vpack.c.b16 %v918, %v917
    %v929 = vpack.c.b16 %v920, %v919
    %v930 = vpack.c.b16 %v922, %v921
    %939 = vmatpush.bf16.msra.mxu0 %v930
    %940 = vmatpush.bf16.msra.mxu0 %v929
    %941 = vmatpush.bf16.msra.mxu0 %v928
    %942 = vmatpush.bf16.msra.mxu0 %v927
    %943 = vmatpush.bf16.msra.mxu0 %v926
    %944 = vmatpush.bf16.msra.mxu0 %v925
    %945 = vmatpush.bf16.msra.mxu0 %v924
    %946 = vmatpush.bf16.msra.mxu0 %v923
    %947 = vmatmul.bf16.gmra.mxu0 %v783
    %v948 = vpop.f32.mrf.mxu0
    %v949 = vadd.f32 %v882, %v948
    %v950 = vpop.f32.mrf.mxu0
    %v951 = vadd.f32 %v884, %v950
    %952 = vmatmul.bf16.gmra.mxu0 %v784
    %v953 = vpop.f32.mrf.mxu0
    %v954 = vadd.f32 %v887, %v953
    %v955 = vpop.f32.mrf.mxu0
    %v956 = vadd.f32 %v889, %v955
    %957 = vdwg.mxu0
    %v958 = vld [vmem:[#allocation2 + $0x2] sm:$0xff]
    %v959 = vld [vmem:[#allocation2 + $0xa] sm:$0xff]
    %v960 = vld [vmem:[#allocation2 + $0x1a] sm:$0xff]
    %v961 = vld [vmem:[#allocation2 + $0x22] sm:$0xff]
    %v962 = vpack.c.bf16 %v959, %v958
    %v963 = vpack.c.bf16 %v961, %v960
    %s964 = scalar_lea.vmem [#allocation8], 128
    %v965 = vld [vmem:[%s964] sm:$0xf]
    %v966 = vld [vmem:[%s964 + $0x4] sm:$0xf]
    %v967 = vld [vmem:[%s964 + $0x8] sm:$0xf]
    %v968 = vld [vmem:[%s964 + $0xc] sm:$0xf]
    %v969 = vld [vmem:[%s964 + $0x10] sm:$0xf]
    %v970 = vld [vmem:[%s964 + $0x14] sm:$0xf]
    %v971 = vld [vmem:[%s964 + $0x18] sm:$0xf]
    %v972 = vld [vmem:[%s964 + $0x1c] sm:$0xf]
    %v973 = vld [vmem:[%s964 + $0x20] sm:$0xf]
    %v974 = vld [vmem:[%s964 + $0x24] sm:$0xf]
    %v975 = vld [vmem:[%s964 + $0x28] sm:$0xf]
    %v976 = vld [vmem:[%s964 + $0x2c] sm:$0xf]
    %v977 = vld [vmem:[%s964 + $0x30] sm:$0xf]
    %v978 = vld [vmem:[%s964 + $0x34] sm:$0xf]
    %v979 = vld [vmem:[%s964 + $0x38] sm:$0xf]
    %v980 = vld [vmem:[%s964 + $0x3c] sm:$0xf]
    %v997 = vunpack.c.l.b16 %v965
    %v998 = vunpack.c.l.b16 %v966
    %v999 = vunpack.c.l.b16 %v967
    %v1000 = vunpack.c.l.b16 %v968
    %v1001 = vunpack.c.l.b16 %v969
    %v1002 = vunpack.c.l.b16 %v970
    %v1003 = vunpack.c.l.b16 %v971
    %v1004 = vunpack.c.l.b16 %v972
    %v1005 = vunpack.c.l.b16 %v973
    %v1006 = vunpack.c.l.b16 %v974
    %v1007 = vunpack.c.l.b16 %v975
    %v1008 = vunpack.c.l.b16 %v976
    %v1009 = vunpack.c.l.b16 %v977
    %v1010 = vunpack.c.l.b16 %v978
    %v1011 = vunpack.c.l.b16 %v979
    %v1012 = vunpack.c.l.b16 %v980
    %v1013 = vpack.c.b16 %v998, %v997
    %v1014 = vpack.c.b16 %v1000, %v999
    %v1015 = vpack.c.b16 %v1002, %v1001
    %v1016 = vpack.c.b16 %v1004, %v1003
    %v1017 = vpack.c.b16 %v1006, %v1005
    %v1018 = vpack.c.b16 %v1008, %v1007
    %v1019 = vpack.c.b16 %v1010, %v1009
    %v1020 = vpack.c.b16 %v1012, %v1011
    %1029 = vmatpush.bf16.msra.mxu0 %v1020
    %1030 = vmatpush.bf16.msra.mxu0 %v1019
    %1031 = vmatpush.bf16.msra.mxu0 %v1018
    %1032 = vmatpush.bf16.msra.mxu0 %v1017
    %1033 = vmatpush.bf16.msra.mxu0 %v1016
    %1034 = vmatpush.bf16.msra.mxu0 %v1015
    %1035 = vmatpush.bf16.msra.mxu0 %v1014
    %1036 = vmatpush.bf16.msra.mxu0 %v1013
    %1037 = vmatmul.bf16.gmra.mxu0 %v962
    %v1038 = vpop.f32.mrf.mxu0
    %v1039 = vadd.f32 0.0, %v1038
    %v1040 = vpop.f32.mrf.mxu0
    %v1041 = vadd.f32 0.0, %v1040
    %1042 = vmatmul.bf16.gmra.mxu0 %v963
    %v1043 = vpop.f32.mrf.mxu0
    %v1044 = vadd.f32 0.0, %v1043
    %v1045 = vpop.f32.mrf.mxu0
    %v1046 = vadd.f32 0.0, %v1045
    %1047 = vdwg.mxu0
    %v1048 = vadd.f32 %v949, %v1039
    %v1049 = vadd.f32 %v951, %v1041
    %v1050 = vadd.f32 %v954, %v1044
    %v1051 = vadd.f32 %v956, %v1046
    %v1052 = vld [vmem:[%s8] sm:$0x1]
    %v1054 = vperm.slane %v1052, 0
    %v1056 = vadd.f32 %v1048, %v1054
    %v1057 = vadd.f32 %v1049, %v1054
    %v1058 = vadd.f32 %v1050, %v1054
    %v1059 = vadd.f32 %v1051, %v1054
    %v1060 = vld [vmem:[%s0 + $0x1] sm:$0xff]
    %v1061 = vld [vmem:[%s0 + $0x9] sm:$0xff]
    %v1062 = vld [vmem:[%s0 + $0x19] sm:$0xff]
    %v1063 = vld [vmem:[%s0 + $0x21] sm:$0xff]
    %v1064 = vpack.c.bf16 %v1061, %v1060
    %v1065 = vpack.c.bf16 %v1063, %v1062
    %v1066 = vld [vmem:[%s9] sm:$0xf]
    %v1067 = vld [vmem:[%s9 + $0x4] sm:$0xf]
    %v1068 = vld [vmem:[%s9 + $0x8] sm:$0xf]
    %v1069 = vld [vmem:[%s9 + $0xc] sm:$0xf]
    %v1070 = vld [vmem:[%s9 + $0x10] sm:$0xf]
    %v1071 = vld [vmem:[%s9 + $0x14] sm:$0xf]
    %v1072 = vld [vmem:[%s9 + $0x18] sm:$0xf]
    %v1073 = vld [vmem:[%s9 + $0x1c] sm:$0xf]
    %v1074 = vld [vmem:[%s9 + $0x20] sm:$0xf]
    %v1084 = vunpack.c.l.b16 %v1066
    %v1085 = vunpack.c.l.b16 %v1067
    %v1086 = vunpack.c.l.b16 %v1068
    %v1087 = vunpack.c.l.b16 %v1069
    %v1088 = vunpack.c.l.b16 %v1070
    %v1089 = vunpack.c.l.b16 %v1071
    %v1090 = vunpack.c.l.b16 %v1072
    %v1091 = vunpack.c.l.b16 %v1073
    %v1092 = vunpack.c.l.b16 %v1074
    %v1093 = vpack.c.b16 %v1085, %v1084
    %v1094 = vpack.c.b16 %v1087, %v1086
    %v1095 = vpack.c.b16 %v1089, %v1088
    %v1096 = vpack.c.b16 %v1091, %v1090
    %v1097 = vpack.c.b16 %v1092, %v1092
    %v1103 = vsel %vm142, %v1064, 0
    %v1106 = vsel %vm142, %v1065, 0
    %v1109 = vsel %vm149, %v1097, 0
    %1111 = vmatpush.bf16.msra.mxu0 0
    %1112 = vmatpush.bf16.msra.mxu0 0
    %1113 = vmatpush.bf16.msra.mxu0 0
    %1114 = vmatpush.bf16.msra.mxu0 %v1109
    %1115 = vmatpush.bf16.msra.mxu0 %v1096
    %1116 = vmatpush.bf16.msra.mxu0 %v1095
    %1117 = vmatpush.bf16.msra.mxu0 %v1094
    %1118 = vmatpush.bf16.msra.mxu0 %v1093
    %1119 = vmatmul.bf16.gmra.mxu0 %v1103
    %v1120 = vpop.f32.mrf.mxu0
    %v1121 = vadd.f32 0.0, %v1120
    %v1122 = vpop.f32.mrf.mxu0
    %v1123 = vadd.f32 0.0, %v1122
    %1124 = vmatmul.bf16.gmra.mxu0 %v1106
    %v1125 = vpop.f32.mrf.mxu0
    %v1126 = vadd.f32 0.0, %v1125
    %v1127 = vpop.f32.mrf.mxu0
    %v1128 = vadd.f32 0.0, %v1127
    %1129 = vdwg.mxu0
    %v1130 = vadd.f32 %v1056, %v1121
    %v1131 = vadd.f32 %v1057, %v1123
    %v1132 = vadd.f32 %v1058, %v1126
    %v1133 = vadd.f32 %v1059, %v1128
    %v1134 = vxor.u32 %v1130, 2147483648
    %v1135 = vxor.u32 %v1131, 2147483648
    %v1136 = vxor.u32 %v1132, 2147483648
    %v1137 = vxor.u32 %v1133, 2147483648
    %v1138 = vmul.f32 %v1134, 1.442695
    %v1139 = vpow.pop %v1138
    %v1140 = vmul.f32 %v1135, 1.442695
    %v1141 = vpow.pop %v1140
    %v1142 = vmul.f32 %v1136, 1.442695
    %v1143 = vpow.pop %v1142
    %v1144 = vmul.f32 %v1137, 1.442695
    %v1145 = vpow.pop %v1144
    %v1146 = vadd.f32 %v1139, 1.0
    %v1147 = vadd.f32 %v1141, 1.0
    %v1148 = vadd.f32 %v1143, 1.0
    %v1149 = vadd.f32 %v1145, 1.0
    %v1150 = vrcp.pop %v1146
    %v1151 = vmul.f32 %v1146, %v1150
    %v1152 = vsub.f32 1.0, %v1151
    %v1153 = vmul.f32 %v1150, %v1152
    %v1154 = vadd.f32 %v1150, %v1153
    %vm1155 = vweird.f32 %v1146
    %vm1156 = vweird.f32 %v1150
    %vm1157 = vmor %vm1155, %vm1156
    %v1158 = vsel %vm1157, %v1150, %v1154
    %v1159 = vand.u32 2147483647, %v1146
    %vm1160 = vcmp.eq.f32.partialorder %v1159, 8.507059e+37
    %v1161 = vand.u32 %v1146, 2147483648
    %v1162 = vor.u32 1.1754944e-38, %v1161
    %v1163 = vsel %vm1160, %v1162, %v1158
    %v1164 = vmul.f32 1.0, %v1163
    %v1165 = vrcp.pop %v1147
    %v1166 = vmul.f32 %v1147, %v1165
    %v1167 = vsub.f32 1.0, %v1166
    %v1168 = vmul.f32 %v1165, %v1167
    %v1169 = vadd.f32 %v1165, %v1168
    %vm1170 = vweird.f32 %v1147
    %vm1171 = vweird.f32 %v1165
    %vm1172 = vmor %vm1170, %vm1171
    %v1173 = vsel %vm1172, %v1165, %v1169
    %v1174 = vand.u32 2147483647, %v1147
    %vm1175 = vcmp.eq.f32.partialorder %v1174, 8.507059e+37
    %v1176 = vand.u32 %v1147, 2147483648
    %v1177 = vor.u32 1.1754944e-38, %v1176
    %v1178 = vsel %vm1175, %v1177, %v1173
    %v1179 = vmul.f32 1.0, %v1178
    %v1180 = vrcp.pop %v1148
    %v1181 = vmul.f32 %v1148, %v1180
    %v1182 = vsub.f32 1.0, %v1181
    %v1183 = vmul.f32 %v1180, %v1182
    %v1184 = vadd.f32 %v1180, %v1183
    %vm1185 = vweird.f32 %v1148
    %vm1186 = vweird.f32 %v1180
    %vm1187 = vmor %vm1185, %vm1186
    %v1188 = vsel %vm1187, %v1180, %v1184
    %v1189 = vand.u32 2147483647, %v1148
    %vm1190 = vcmp.eq.f32.partialorder %v1189, 8.507059e+37
    %v1191 = vand.u32 %v1148, 2147483648
    %v1192 = vor.u32 1.1754944e-38, %v1191
    %v1193 = vsel %vm1190, %v1192, %v1188
    %v1194 = vmul.f32 1.0, %v1193
    %v1195 = vrcp.pop %v1149
    %v1196 = vmul.f32 %v1149, %v1195
    %v1197 = vsub.f32 1.0, %v1196
    %v1198 = vmul.f32 %v1195, %v1197
    %v1199 = vadd.f32 %v1195, %v1198
    %vm1200 = vweird.f32 %v1149
    %vm1201 = vweird.f32 %v1195
    %vm1202 = vmor %vm1200, %vm1201
    %v1203 = vsel %vm1202, %v1195, %v1199
    %v1204 = vand.u32 2147483647, %v1149
    %vm1205 = vcmp.eq.f32.partialorder %v1204, 8.507059e+37
    %v1206 = vand.u32 %v1149, 2147483648
    %v1207 = vor.u32 1.1754944e-38, %v1206
    %v1208 = vsel %vm1205, %v1207, %v1203
    %v1209 = vmul.f32 1.0, %v1208
    %v1210 = vmul.f32 %v1130, %v1164
    %v1211 = vmul.f32 %v1131, %v1179
    %v1212 = vmul.f32 %v1132, %v1194
    %v1213 = vmul.f32 %v1133, %v1209
    %1214 = vst [vmem:[#allocation9] sm:$0xff] %v1210
    %1215 = vst [vmem:[#allocation9 + $0x8] sm:$0xff] %v1211
    %1216 = vst [vmem:[#allocation9 + $0x10] sm:$0xff] %v1212
    %1217 = vst [vmem:[#allocation9 + $0x18] sm:$0xff] %v1213
    // Predicated region
    $region54: #{tpu_custom_call.1} parent=1 // pred_check
      _
    $region55: #{tpu_custom_call.1} parent=1 // pred_check_branch
      %1219 = sbr.rel (0) target = $region57
    $region56: #{tpu_custom_call.1} parent=1 // pred_region
      %1221 = vsyncadd [#allocation5], 0
      %s1222 = sshll.u32 [#allocation9], 4
      %s1223 = int_to_ptr.vmem [resolvable:$true] %s1222
      %s1224 = sshll.u32 %s10, 4
      %s1225 = int_to_ptr.hbm [resolvable:$true] %s1224
      %1230 = dma.vmem_to_hbm [thread:$0]  %s1223, 512, %s1225, [#allocation5], 128, 128, 8
    $region57: #{tpu_custom_call.1} parent=1 // pred_fallthru
      _
    // Predicated region
    $region58: #{tpu_custom_call.1} parent=1 // pred_check
      _
    $region59: #{tpu_custom_call.1} parent=1 // pred_check_branch
      %1232 = sbr.rel (0) target = $region61
    $region60: #{tpu_custom_call.1} parent=1 // pred_region
      %1234 = dma.done [#allocation5], 512
    $region61: #{tpu_custom_call.1} parent=1 // pred_fallthru
      _
    %1235 = vsyncpa [#allocation4], 1
    %1236 = vsyncpa [#allocation7], 1
    %1237 = vsyncpa [#allocation5], 1

</llo_original>
